<compile_context>
chip_gen: v7x
topology: tpu7x:2x2x1
jax: 0.10.0
libtpu: 0.0.40
codegen_flags: <defaults>
</compile_context>

<pallas_src>
import functools
import math

import jax
import jax.numpy as jnp
from jax.experimental import pallas as pl
from jax.experimental.pallas import tpu as pltpu


# packed-vector row indices (see prep_block_params)
_BQ, _BK, _BV, _BO, _LN1G, _LN1B, _B2, _LN2G, _LN2B = range(9)

FFN_ROW_CHUNK = 256          # rows of (Bt*S) processed per FFN chunk


# ----------------------------- kernel ---------------------------------------

def _layernorm(x, gamma, beta, eps):
    mu = jnp.mean(x, axis=-1, keepdims=True)
    var = jnp.mean(jnp.square(x - mu), axis=-1, keepdims=True)
    return (x - mu) * jax.lax.rsqrt(var + eps) * gamma + beta


def encoder_block_kernel(x_ref, mask_ref, wqkv_ref, wo_ref, w1_ref, w2_ref,
                         pvec_ref, b1_ref, out_ref, *, n_heads, eps):
    Bt, S, D = x_ref.shape
    H = n_heads
    dh = D // H
    M = Bt * S
    scale = 1.0 / math.sqrt(dh)

    x = x_ref[...].astype(jnp.float32)            # (Bt, S, D)
    x2 = x.reshape(M, D)
    xb = x2.astype(jnp.bfloat16)                  # bf16 operand for the MXU

    # packed per-feature parameters (f32)
    bq, bk, bv, bo = pvec_ref[_BQ], pvec_ref[_BK], pvec_ref[_BV], pvec_ref[_BO]
    ln1g, ln1b = pvec_ref[_LN1G], pvec_ref[_LN1B]
    b2, ln2g, ln2b = pvec_ref[_B2], pvec_ref[_LN2G], pvec_ref[_LN2B]

    # additive key-padding mask, broadcast ONCE (not per head)
    mask_full = jnp.broadcast_to(mask_ref[...], (Bt, S, S))       # (Bt, S, S) f32

    # ---------------- multi-head self attention ----------------
    attn = jnp.zeros((M, D), jnp.float32)
    for h in range(H):                            # static unroll over heads
        wq_h = wqkv_ref[h]                        # (D, dh) bf16
        wk_h = wqkv_ref[H + h]
        wv_h = wqkv_ref[2 * H + h]

        qh = jnp.dot(xb, wq_h, preferred_element_type=jnp.float32) + bq[h * dh:(h + 1) * dh]
        kh = jnp.dot(xb, wk_h, preferred_element_type=jnp.float32) + bk[h * dh:(h + 1) * dh]
        vh = jnp.dot(xb, wv_h, preferred_element_type=jnp.float32) + bv[h * dh:(h + 1) * dh]

        qh = (qh * scale).reshape(Bt, S, dh).astype(jnp.bfloat16)
        kh = kh.reshape(Bt, S, dh).astype(jnp.bfloat16)
        vh = vh.reshape(Bt, S, dh).astype(jnp.bfloat16)

        s = jnp.einsum("bqd,bkd->bqk", qh, kh,
                       preferred_element_type=jnp.float32) + mask_full
        m = jnp.max(s, axis=-1, keepdims=True)
        probs = jnp.exp(s - m)
        denom = jnp.sum(probs, axis=-1, keepdims=True)
        probs = (probs * pl.reciprocal(denom, approx=True)).astype(jnp.bfloat16)

        ctx = jnp.einsum("bqk,bkd->bqd", probs, vh,
                         preferred_element_type=jnp.float32)      # (Bt, S, dh)
        # output projection without any lane concatenation:
        #   ctx_all @ Wo == sum_h ctx_h @ Wo[h*dh:(h+1)*dh, :]
        attn = attn + jnp.dot(ctx.reshape(M, dh).astype(jnp.bfloat16),
                              wo_ref[h], preferred_element_type=jnp.float32)
    attn = attn + bo

    # residual + LayerNorm 1 (dropout is identity in eval mode)
    y2 = _layernorm(x2 + attn, ln1g, ln1b, eps)                   # (M, D) f32

    # ---------------- feed-forward (row-chunked) ----------------
    b1 = b1_ref[0]
    chunks = []
    for r0 in range(0, M, FFN_ROW_CHUNK):
        r1 = min(M, r0 + FFN_ROW_CHUNK)
        y_c = y2[r0:r1]
        h1 = jnp.dot(y_c.astype(jnp.bfloat16), w1_ref[...],
                     preferred_element_type=jnp.float32) + b1
        h1 = jnp.maximum(h1, 0.0)
        h2 = jnp.dot(h1.astype(jnp.bfloat16), w2_ref[...],
                     preferred_element_type=jnp.float32) + b2
        chunks.append(_layernorm(y_c + h2, ln2g, ln2b, eps))
    z2 = chunks[0] if len(chunks) == 1 else jnp.concatenate(chunks, axis=0)

    out_ref[...] = z2.reshape(Bt, S, D).astype(out_ref.dtype)


# ----------------------------- wrappers --------------------------------------

def prep_block_params(p, n_heads):
    """Host-side layout prep: per-head bf16 weight stacks + packed f32 vectors."""
    D = p["wq"].shape[0]
    dh = D // n_heads

    def per_head_in(w):                  # (D, D) -> (H, D, dh)
        return jnp.transpose(w.reshape(D, n_heads, dh), (1, 0, 2))

    wqkv = jnp.concatenate([per_head_in(p["wq"]),
                            per_head_in(p["wk"]),
                            per_head_in(p["wv"])], axis=0).astype(jnp.bfloat16)
    wo = p["wo"].reshape(n_heads, dh, D).astype(jnp.bfloat16)     # (H, dh, D)
    vecs = jnp.concatenate([p["bq"], p["bk"], p["bv"], p["bo"],
                            p["ln1g"], p["ln1b"], p["b2"],
                            p["ln2g"], p["ln2b"]], axis=0)        # (9, D) f32
    pvec = jnp.zeros((16, D), jnp.float32).at[:9].set(vecs)
    return {"wqkv": wqkv, "wo": wo,
            "w1": p["w1"].astype(jnp.bfloat16),
            "w2": p["w2"].astype(jnp.bfloat16),
            "pvec": pvec, "b1": p["b1"]}


def _batch_tile(B, S, target_rows=128):
    """Largest divisor of B such that Bt*S <= target_rows (fills the MXU M dim)."""
    bt = 1
    for c in range(1, B + 1):
        if B % c == 0 and c * S <= target_rows:
            bt = c
    return bt


def encoder_block(x, mask_add, bp, *, n_heads, eps):
    """One encoder block via a fused Pallas kernel.  x: (B,S,D), mask_add: (B,1,S)."""
    B, S, D = x.shape
    F = bp["w1"].shape[1]
    Bt = _batch_tile(B, S)

    def rep(shape):                       # weight BlockSpec, constant over the grid
        return pl.BlockSpec(shape, lambda b: (0,) * len(shape))

    kernel = functools.partial(encoder_block_kernel, n_heads=n_heads, eps=eps)

    # explicit scoped-VMEM budget: double-buffered weights + activation tiles
    weight_bytes = 2 * (bp["wqkv"].size + bp["wo"].size + bp["w1"].size + bp["w2"].size) \
                 + 4 * (bp["pvec"].size + bp["b1"].size)
    act_bytes = 4 * Bt * S * (4 * D + 2 * S) + 8 * min(Bt * S, FFN_ROW_CHUNK) * F
    vmem_limit = int(min(112 * 2**20, max(32 * 2**20, 3 * weight_bytes + 4 * act_bytes)))

    return pl.pallas_call(
        kernel,
        out_shape=jax.ShapeDtypeStruct((B, S, D), jnp.float32),
        grid=(B // Bt,),
        in_specs=[
            pl.BlockSpec((Bt, S, D), lambda b: (b, 0, 0)),   # x
            pl.BlockSpec((Bt, 1, S), lambda b: (b, 0, 0)),   # additive key mask
            rep(bp["wqkv"].shape),                           # (3H, D, dh) bf16
            rep(bp["wo"].shape),                             # (H, dh, D) bf16
            rep(bp["w1"].shape),                             # (D, F) bf16
            rep(bp["w2"].shape),                             # (F, D) bf16
            rep(bp["pvec"].shape),                           # (16, D) f32 packed vectors
            rep(bp["b1"].shape),                             # (1, F) f32
        ],
        out_specs=pl.BlockSpec((Bt, S, D), lambda b: (b, 0, 0)),
        compiler_params=pltpu.CompilerParams(
            dimension_semantics=("parallel",),
            vmem_limit_bytes=vmem_limit,
        ),
    )(x, mask_add, bp["wqkv"], bp["wo"], bp["w1"], bp["w2"], bp["pvec"], bp["b1"])


def positional_encoding(seq_len, d_model):
    pos = jnp.arange(seq_len, dtype=jnp.float32)[:, None]
    i = jnp.arange(0, d_model, 2, dtype=jnp.float32)
    div = jnp.exp(-jnp.log(10000.0) * i / d_model)
    pe = jnp.zeros((seq_len, d_model), jnp.float32)
    pe = pe.at[:, 0::2].set(jnp.sin(pos * div))
    pe = pe.at[:, 1::2].set(jnp.cos(pos * div))
    return pe


def init_params(key, n_tokens, n_blocks, d_model, ffn_n_factors):
    keys = jax.random.split(key, 1 + n_blocks)
    F = ffn_n_factors * d_model
    params = {"embedding": 0.02 * jax.random.normal(keys[0], (n_tokens, d_model),
                                                    jnp.float32),
              "blocks": []}
    for b in range(n_blocks):
        ks = jax.random.split(keys[1 + b], 6)
        s = 1.0 / math.sqrt(d_model)
        blk = {
            "wq": s * jax.random.normal(ks[0], (d_model, d_model), jnp.float32),
            "wk": s * jax.random.normal(ks[1], (d_model, d_model), jnp.float32),
            "wv": s * jax.random.normal(ks[2], (d_model, d_model), jnp.float32),
            "wo": s * jax.random.normal(ks[3], (d_model, d_model), jnp.float32),
            "bq": jnp.zeros((1, d_model), jnp.float32),
            "bk": jnp.zeros((1, d_model), jnp.float32),
            "bv": jnp.zeros((1, d_model), jnp.float32),
            "bo": jnp.zeros((1, d_model), jnp.float32),
            "w1": s * jax.random.normal(ks[4], (d_model, F), jnp.float32),
            "b1": jnp.zeros((1, F), jnp.float32),
            "w2": (1.0 / math.sqrt(F)) * jax.random.normal(ks[5], (F, d_model),
                                                           jnp.float32),
            "b2": jnp.zeros((1, d_model), jnp.float32),
            "ln1g": jnp.ones((1, d_model), jnp.float32),
            "ln1b": jnp.zeros((1, d_model), jnp.float32),
            "ln2g": jnp.ones((1, d_model), jnp.float32),
            "ln2b": jnp.zeros((1, d_model), jnp.float32),
        }
        params["blocks"].append(blk)
    return params


def encoder_forward(tokens, attn_mask, params, *, n_heads, eps=1e-5):
    """tokens: (B,S) int32, attn_mask: (B,S) bool (True = valid token)."""
    B, S = tokens.shape
    d_model = params["embedding"].shape[1]
    # embedding lookup + positional encoding (glue, plain JAX)
    x = jnp.take(params["embedding"], tokens, axis=0)              # (B,S,D)
    x = x + positional_encoding(S, d_model)[None, :, :]
    # attn_mask.unsqueeze(1).unsqueeze(2).logical_not() -> additive key-padding mask
    mask_add = jnp.where(attn_mask, 0.0, -1e9).astype(jnp.float32)[:, None, :]
    # TODO(synk): fuse all blocks into one pallas_call (or cross-call weight
    # prefetch) to hide the per-layer HBM round trip behind the previous layer.
    for blk in params["blocks"]:
        bp = prep_block_params(blk, n_heads)
        x = encoder_block(x, mask_add, bp, n_heads=n_heads, eps=eps)
    # TODO(synk): get_weights=True path (per-block attention maps) is not wired
    # through the kernel outputs; forward returns (x, None).
    return x, None


# ----------------------------- main ------------------------------------------

if __name__ == "__main__":
    n_tokens, n_blocks, d_model, n_heads = 50, 2, 32, 4
    B, S = 2, 8

    key = jax.random.PRNGKey(0)
    kp, kt = jax.random.split(key)
    params = init_params(kp, n_tokens, n_blocks, d_model, ffn_n_factors=4)

    tokens = jax.random.randint(kt, (B, S), 0, n_tokens, dtype=jnp.int32)
    # last two positions of second sequence are padding
    attn_mask = jnp.array([[True] * S,
                           [True] * (S - 2) + [False] * 2], dtype=jnp.bool_)

    out, _ = encoder_forward(tokens, attn_mask, params, n_heads=n_heads)
    out = jax.block_until_ready(out)
    assert out.shape == (B, S, d_model) and bool(jnp.all(jnp.isfinite(out)))
    print("KERNEL_OK")
</pallas_src>

<mosaic_0001>
module attributes {stable_mosaic.version = 11 : i64} {
  func.func @encoder_block_kernel(%arg0: i32, %arg1: memref<2x8x32xf32, #tpu.memory_space<vmem>>, %arg2: memref<2x1x8xf32, #tpu.memory_space<vmem>>, %arg3: memref<12x32x8xbf16, #tpu.memory_space<vmem>>, %arg4: memref<4x8x32xbf16, #tpu.memory_space<vmem>>, %arg5: memref<32x128xbf16, #tpu.memory_space<vmem>>, %arg6: memref<128x32xbf16, #tpu.memory_space<vmem>>, %arg7: memref<16x32xf32, #tpu.memory_space<vmem>>, %arg8: memref<1x128xf32, #tpu.memory_space<vmem>>, %arg9: memref<2x8x32xf32, #tpu.memory_space<vmem>>) attributes {dimension_semantics = [#tpu.dimension_semantics<parallel>], iteration_bounds = array<i64: 1>, scalar_prefetch = 0 : i64, scratch_operands = 0 : i64, tpu.core_type = #tpu.core_type<tc>, window_params = [{transform_indices = @transform_0, window_bounds = array<i64: 2, 8, 32>}, {transform_indices = @transform_1, window_bounds = array<i64: 2, 1, 8>}, {pipeline_mode = #tpu.pipeline_mode<synchronous>, transform_indices = @transform_2, window_bounds = array<i64: 12, 32, 8>}, {pipeline_mode = #tpu.pipeline_mode<synchronous>, transform_indices = @transform_3, window_bounds = array<i64: 4, 8, 32>}, {pipeline_mode = #tpu.pipeline_mode<synchronous>, transform_indices = @transform_4, window_bounds = array<i64: 32, 128>}, {pipeline_mode = #tpu.pipeline_mode<synchronous>, transform_indices = @transform_5, window_bounds = array<i64: 128, 32>}, {pipeline_mode = #tpu.pipeline_mode<synchronous>, transform_indices = @transform_6, window_bounds = array<i64: 16, 32>}, {pipeline_mode = #tpu.pipeline_mode<synchronous>, transform_indices = @transform_7, window_bounds = array<i64: 1, 128>}, {transform_indices = @transform_8, window_bounds = array<i64: 2, 8, 32>}]} {
    %c0 = arith.constant 0 : index
    %c0_0 = arith.constant 0 : index
    %c0_1 = arith.constant 0 : index
    %0 = vector.load %arg1[%c0, %c0_0, %c0_1] : memref<2x8x32xf32, #tpu.memory_space<vmem>>, vector<2x8x32xf32>
    %1 = vector.shape_cast %0 : vector<2x8x32xf32> to vector<16x32xf32>
    %2 = arith.truncf %1 : vector<16x32xf32> to vector<16x32xbf16>
    %c0_2 = arith.constant 0 : index
    %c0_3 = arith.constant 0 : index
    %3 = vector.load %arg7[%c0_2, %c0_3] : memref<16x32xf32, #tpu.memory_space<vmem>>, vector<1x32xf32>
    %4 = vector.shape_cast %3 : vector<1x32xf32> to vector<32xf32>
    %c1 = arith.constant 1 : index
    %c0_4 = arith.constant 0 : index
    %5 = vector.load %arg7[%c1, %c0_4] : memref<16x32xf32, #tpu.memory_space<vmem>>, vector<1x32xf32>
    %6 = vector.shape_cast %5 : vector<1x32xf32> to vector<32xf32>
    %c2 = arith.constant 2 : index
    %c0_5 = arith.constant 0 : index
    %7 = vector.load %arg7[%c2, %c0_5] : memref<16x32xf32, #tpu.memory_space<vmem>>, vector<1x32xf32>
    %8 = vector.shape_cast %7 : vector<1x32xf32> to vector<32xf32>
    %c3 = arith.constant 3 : index
    %c0_6 = arith.constant 0 : index
    %9 = vector.load %arg7[%c3, %c0_6] : memref<16x32xf32, #tpu.memory_space<vmem>>, vector<1x32xf32>
    %10 = vector.shape_cast %9 : vector<1x32xf32> to vector<32xf32>
    %c4 = arith.constant 4 : index
    %c0_7 = arith.constant 0 : index
    %11 = vector.load %arg7[%c4, %c0_7] : memref<16x32xf32, #tpu.memory_space<vmem>>, vector<1x32xf32>
    %12 = vector.shape_cast %11 : vector<1x32xf32> to vector<32xf32>
    %c5 = arith.constant 5 : index
    %c0_8 = arith.constant 0 : index
    %13 = vector.load %arg7[%c5, %c0_8] : memref<16x32xf32, #tpu.memory_space<vmem>>, vector<1x32xf32>
    %14 = vector.shape_cast %13 : vector<1x32xf32> to vector<32xf32>
    %c6 = arith.constant 6 : index
    %c0_9 = arith.constant 0 : index
    %15 = vector.load %arg7[%c6, %c0_9] : memref<16x32xf32, #tpu.memory_space<vmem>>, vector<1x32xf32>
    %16 = vector.shape_cast %15 : vector<1x32xf32> to vector<32xf32>
    %c7 = arith.constant 7 : index
    %c0_10 = arith.constant 0 : index
    %17 = vector.load %arg7[%c7, %c0_10] : memref<16x32xf32, #tpu.memory_space<vmem>>, vector<1x32xf32>
    %18 = vector.shape_cast %17 : vector<1x32xf32> to vector<32xf32>
    %c8 = arith.constant 8 : index
    %c0_11 = arith.constant 0 : index
    %19 = vector.load %arg7[%c8, %c0_11] : memref<16x32xf32, #tpu.memory_space<vmem>>, vector<1x32xf32>
    %20 = vector.shape_cast %19 : vector<1x32xf32> to vector<32xf32>
    %c0_12 = arith.constant 0 : index
    %c0_13 = arith.constant 0 : index
    %c0_14 = arith.constant 0 : index
    %21 = vector.load %arg2[%c0_12, %c0_13, %c0_14] : memref<2x1x8xf32, #tpu.memory_space<vmem>>, vector<2x1x8xf32>
    %22 = vector.shape_cast %21 : vector<2x1x8xf32> to vector<2x1x8xf32>
    %23 = vector.broadcast %22 : vector<2x1x8xf32> to vector<2x8x8xf32>
    %cst = arith.constant 0.000000e+00 : f32
    %24 = vector.broadcast %cst : f32 to vector<16x32xf32>
    %c0_15 = arith.constant 0 : index
    %c0_16 = arith.constant 0 : index
    %c0_17 = arith.constant 0 : index
    %25 = vector.load %arg3[%c0_15, %c0_16, %c0_17] : memref<12x32x8xbf16, #tpu.memory_space<vmem>>, vector<1x32x8xbf16>
    %26 = vector.shape_cast %25 : vector<1x32x8xbf16> to vector<32x8xbf16>
    %c4_18 = arith.constant 4 : index
    %c0_19 = arith.constant 0 : index
    %c0_20 = arith.constant 0 : index
    %27 = vector.load %arg3[%c4_18, %c0_19, %c0_20] : memref<12x32x8xbf16, #tpu.memory_space<vmem>>, vector<1x32x8xbf16>
    %28 = vector.shape_cast %27 : vector<1x32x8xbf16> to vector<32x8xbf16>
    %c8_21 = arith.constant 8 : index
    %c0_22 = arith.constant 0 : index
    %c0_23 = arith.constant 0 : index
    %29 = vector.load %arg3[%c8_21, %c0_22, %c0_23] : memref<12x32x8xbf16, #tpu.memory_space<vmem>>, vector<1x32x8xbf16>
    %30 = vector.shape_cast %29 : vector<1x32x8xbf16> to vector<32x8xbf16>
    %cst_24 = arith.constant dense<0.000000e+00> : vector<16x8xf32>
    %31 = tpu.matmul %2, %26, %cst_24 {dimension_numbers = #tpu.dot_dimension_numbers<[1], [0], [0], [1], [0, 0, 1, 1], [], []>} : vector<16x32xbf16>, vector<32x8xbf16>, vector<16x8xf32> -> vector<16x8xf32>
    %32 = vector.extract_strided_slice %4 {offsets = [0], sizes = [8], strides = [1]} : vector<32xf32> to vector<8xf32>
    %33 = vector.shape_cast %32 : vector<8xf32> to vector<1x8xf32>
    %34 = vector.broadcast %33 : vector<1x8xf32> to vector<16x8xf32>
    %35 = arith.addf %31, %34 : vector<16x8xf32>
    %cst_25 = arith.constant dense<0.000000e+00> : vector<16x8xf32>
    %36 = tpu.matmul %2, %28, %cst_25 {dimension_numbers = #tpu.dot_dimension_numbers<[1], [0], [0], [1], [0, 0, 1, 1], [], []>} : vector<16x32xbf16>, vector<32x8xbf16>, vector<16x8xf32> -> vector<16x8xf32>
    %37 = vector.extract_strided_slice %6 {offsets = [0], sizes = [8], strides = [1]} : vector<32xf32> to vector<8xf32>
    %38 = vector.shape_cast %37 : vector<8xf32> to vector<1x8xf32>
    %39 = vector.broadcast %38 : vector<1x8xf32> to vector<16x8xf32>
    %40 = arith.addf %36, %39 : vector<16x8xf32>
    %cst_26 = arith.constant dense<0.000000e+00> : vector<16x8xf32>
    %41 = tpu.matmul %2, %30, %cst_26 {dimension_numbers = #tpu.dot_dimension_numbers<[1], [0], [0], [1], [0, 0, 1, 1], [], []>} : vector<16x32xbf16>, vector<32x8xbf16>, vector<16x8xf32> -> vector<16x8xf32>
    %42 = vector.extract_strided_slice %8 {offsets = [0], sizes = [8], strides = [1]} : vector<32xf32> to vector<8xf32>
    %43 = vector.shape_cast %42 : vector<8xf32> to vector<1x8xf32>
    %44 = vector.broadcast %43 : vector<1x8xf32> to vector<16x8xf32>
    %45 = arith.addf %41, %44 : vector<16x8xf32>
    %cst_27 = arith.constant 0.353553385 : f32
    %46 = vector.broadcast %cst_27 : f32 to vector<16x8xf32>
    %47 = arith.mulf %35, %46 : vector<16x8xf32>
    %48 = vector.shape_cast %47 : vector<16x8xf32> to vector<2x8x8xf32>
    %49 = arith.truncf %48 : vector<2x8x8xf32> to vector<2x8x8xbf16>
    %50 = vector.shape_cast %40 : vector<16x8xf32> to vector<2x8x8xf32>
    %51 = arith.truncf %50 : vector<2x8x8xf32> to vector<2x8x8xbf16>
    %52 = vector.shape_cast %45 : vector<16x8xf32> to vector<2x8x8xf32>
    %53 = arith.truncf %52 : vector<2x8x8xf32> to vector<2x8x8xbf16>
    "tpu.trace_start"() <{level = 10 : i32, message = "bqd,bkd->bqk"}> : () -> ()
    %cst_28 = arith.constant dense<0.000000e+00> : vector<2x8x8xf32>
    %54 = tpu.matmul %49, %51, %cst_28 {dimension_numbers = #tpu.dot_dimension_numbers<[2], [2], [1], [1], [0, 0, 0, 1, 1, 1], [0], [0]>} : vector<2x8x8xbf16>, vector<2x8x8xbf16>, vector<2x8x8xf32> -> vector<2x8x8xf32>
    "tpu.trace_stop"() : () -> ()
    %55 = arith.addf %54, %23 : vector<2x8x8xf32>
    %cst_29 = arith.constant dense<0xFF800000> : vector<2x8xf32>
    %56 = vector.multi_reduction <maximumf>, %55, %cst_29 [2] : vector<2x8x8xf32> to vector<2x8xf32>
    %57 = vector.shape_cast %56 : vector<2x8xf32> to vector<2x8x1xf32>
    %58 = vector.broadcast %57 : vector<2x8x1xf32> to vector<2x8x8xf32>
    %59 = arith.subf %55, %58 : vector<2x8x8xf32>
    %60 = math.exp %59 : vector<2x8x8xf32>
    %cst_30 = arith.constant dense<0.000000e+00> : vector<2x8xf32>
    %61 = vector.multi_reduction <add>, %60, %cst_30 [2] : vector<2x8x8xf32> to vector<2x8xf32>
    %62 = vector.shape_cast %61 : vector<2x8xf32> to vector<2x8x1xf32>
    %63 = tpu.reciprocal %62 {approx = true} : vector<2x8x1xf32> -> vector<2x8x1xf32>
    %64 = vector.broadcast %63 : vector<2x8x1xf32> to vector<2x8x8xf32>
    %65 = arith.mulf %60, %64 : vector<2x8x8xf32>
    %66 = arith.truncf %65 : vector<2x8x8xf32> to vector<2x8x8xbf16>
    "tpu.trace_start"() <{level = 10 : i32, message = "bqk,bkd->bqd"}> : () -> ()
    %cst_31 = arith.constant dense<0.000000e+00> : vector<2x8x8xf32>
    %67 = tpu.matmul %66, %53, %cst_31 {dimension_numbers = #tpu.dot_dimension_numbers<[2], [1], [1], [2], [0, 0, 0, 1, 1, 2], [0], [0]>} : vector<2x8x8xbf16>, vector<2x8x8xbf16>, vector<2x8x8xf32> -> vector<2x8x8xf32>
    "tpu.trace_stop"() : () -> ()
    %68 = vector.shape_cast %67 : vector<2x8x8xf32> to vector<16x8xf32>
    %69 = arith.truncf %68 : vector<16x8xf32> to vector<16x8xbf16>
    %c0_32 = arith.constant 0 : index
    %c0_33 = arith.constant 0 : index
    %c0_34 = arith.constant 0 : index
    %70 = vector.load %arg4[%c0_32, %c0_33, %c0_34] : memref<4x8x32xbf16, #tpu.memory_space<vmem>>, vector<1x8x32xbf16>
    %71 = vector.shape_cast %70 : vector<1x8x32xbf16> to vector<8x32xbf16>
    %cst_35 = arith.constant dense<0.000000e+00> : vector<16x32xf32>
    %72 = tpu.matmul %69, %71, %cst_35 {dimension_numbers = #tpu.dot_dimension_numbers<[1], [0], [0], [1], [0, 0, 1, 1], [], []>} : vector<16x8xbf16>, vector<8x32xbf16>, vector<16x32xf32> -> vector<16x32xf32>
    %73 = arith.addf %24, %72 : vector<16x32xf32>
    %c1_36 = arith.constant 1 : index
    %c0_37 = arith.constant 0 : index
    %c0_38 = arith.constant 0 : index
    %74 = vector.load %arg3[%c1_36, %c0_37, %c0_38] : memref<12x32x8xbf16, #tpu.memory_space<vmem>>, vector<1x32x8xbf16>
    %75 = vector.shape_cast %74 : vector<1x32x8xbf16> to vector<32x8xbf16>
    %c5_39 = arith.constant 5 : index
    %c0_40 = arith.constant 0 : index
    %c0_41 = arith.constant 0 : index
    %76 = vector.load %arg3[%c5_39, %c0_40, %c0_41] : memref<12x32x8xbf16, #tpu.memory_space<vmem>>, vector<1x32x8xbf16>
    %77 = vector.shape_cast %76 : vector<1x32x8xbf16> to vector<32x8xbf16>
    %c9 = arith.constant 9 : index
    %c0_42 = arith.constant 0 : index
    %c0_43 = arith.constant 0 : index
    %78 = vector.load %arg3[%c9, %c0_42, %c0_43] : memref<12x32x8xbf16, #tpu.memory_space<vmem>>, vector<1x32x8xbf16>
    %79 = vector.shape_cast %78 : vector<1x32x8xbf16> to vector<32x8xbf16>
    %cst_44 = arith.constant dense<0.000000e+00> : vector<16x8xf32>
    %80 = tpu.matmul %2, %75, %cst_44 {dimension_numbers = #tpu.dot_dimension_numbers<[1], [0], [0], [1], [0, 0, 1, 1], [], []>} : vector<16x32xbf16>, vector<32x8xbf16>, vector<16x8xf32> -> vector<16x8xf32>
    %81 = vector.extract_strided_slice %4 {offsets = [8], sizes = [8], strides = [1]} : vector<32xf32> to vector<8xf32>
    %82 = vector.shape_cast %81 : vector<8xf32> to vector<1x8xf32>
    %83 = vector.broadcast %82 : vector<1x8xf32> to vector<16x8xf32>
    %84 = arith.addf %80, %83 : vector<16x8xf32>
    %cst_45 = arith.constant dense<0.000000e+00> : vector<16x8xf32>
    %85 = tpu.matmul %2, %77, %cst_45 {dimension_numbers = #tpu.dot_dimension_numbers<[1], [0], [0], [1], [0, 0, 1, 1], [], []>} : vector<16x32xbf16>, vector<32x8xbf16>, vector<16x8xf32> -> vector<16x8xf32>
    %86 = vector.extract_strided_slice %6 {offsets = [8], sizes = [8], strides = [1]} : vector<32xf32> to vector<8xf32>
    %87 = vector.shape_cast %86 : vector<8xf32> to vector<1x8xf32>
    %88 = vector.broadcast %87 : vector<1x8xf32> to vector<16x8xf32>
    %89 = arith.addf %85, %88 : vector<16x8xf32>
    %cst_46 = arith.constant dense<0.000000e+00> : vector<16x8xf32>
    %90 = tpu.matmul %2, %79, %cst_46 {dimension_numbers = #tpu.dot_dimension_numbers<[1], [0], [0], [1], [0, 0, 1, 1], [], []>} : vector<16x32xbf16>, vector<32x8xbf16>, vector<16x8xf32> -> vector<16x8xf32>
    %91 = vector.extract_strided_slice %8 {offsets = [8], sizes = [8], strides = [1]} : vector<32xf32> to vector<8xf32>
    %92 = vector.shape_cast %91 : vector<8xf32> to vector<1x8xf32>
    %93 = vector.broadcast %92 : vector<1x8xf32> to vector<16x8xf32>
    %94 = arith.addf %90, %93 : vector<16x8xf32>
    %cst_47 = arith.constant 0.353553385 : f32
    %95 = vector.broadcast %cst_47 : f32 to vector<16x8xf32>
    %96 = arith.mulf %84, %95 : vector<16x8xf32>
    %97 = vector.shape_cast %96 : vector<16x8xf32> to vector<2x8x8xf32>
    %98 = arith.truncf %97 : vector<2x8x8xf32> to vector<2x8x8xbf16>
    %99 = vector.shape_cast %89 : vector<16x8xf32> to vector<2x8x8xf32>
    %100 = arith.truncf %99 : vector<2x8x8xf32> to vector<2x8x8xbf16>
    %101 = vector.shape_cast %94 : vector<16x8xf32> to vector<2x8x8xf32>
    %102 = arith.truncf %101 : vector<2x8x8xf32> to vector<2x8x8xbf16>
    "tpu.trace_start"() <{level = 10 : i32, message = "bqd,bkd->bqk"}> : () -> ()
    %cst_48 = arith.constant dense<0.000000e+00> : vector<2x8x8xf32>
    %103 = tpu.matmul %98, %100, %cst_48 {dimension_numbers = #tpu.dot_dimension_numbers<[2], [2], [1], [1], [0, 0, 0, 1, 1, 1], [0], [0]>} : vector<2x8x8xbf16>, vector<2x8x8xbf16>, vector<2x8x8xf32> -> vector<2x8x8xf32>
    "tpu.trace_stop"() : () -> ()
    %104 = arith.addf %103, %23 : vector<2x8x8xf32>
    %cst_49 = arith.constant dense<0xFF800000> : vector<2x8xf32>
    %105 = vector.multi_reduction <maximumf>, %104, %cst_49 [2] : vector<2x8x8xf32> to vector<2x8xf32>
    %106 = vector.shape_cast %105 : vector<2x8xf32> to vector<2x8x1xf32>
    %107 = vector.broadcast %106 : vector<2x8x1xf32> to vector<2x8x8xf32>
    %108 = arith.subf %104, %107 : vector<2x8x8xf32>
    %109 = math.exp %108 : vector<2x8x8xf32>
    %cst_50 = arith.constant dense<0.000000e+00> : vector<2x8xf32>
    %110 = vector.multi_reduction <add>, %109, %cst_50 [2] : vector<2x8x8xf32> to vector<2x8xf32>
    %111 = vector.shape_cast %110 : vector<2x8xf32> to vector<2x8x1xf32>
    %112 = tpu.reciprocal %111 {approx = true} : vector<2x8x1xf32> -> vector<2x8x1xf32>
    %113 = vector.broadcast %112 : vector<2x8x1xf32> to vector<2x8x8xf32>
    %114 = arith.mulf %109, %113 : vector<2x8x8xf32>
    %115 = arith.truncf %114 : vector<2x8x8xf32> to vector<2x8x8xbf16>
    "tpu.trace_start"() <{level = 10 : i32, message = "bqk,bkd->bqd"}> : () -> ()
    %cst_51 = arith.constant dense<0.000000e+00> : vector<2x8x8xf32>
    %116 = tpu.matmul %115, %102, %cst_51 {dimension_numbers = #tpu.dot_dimension_numbers<[2], [1], [1], [2], [0, 0, 0, 1, 1, 2], [0], [0]>} : vector<2x8x8xbf16>, vector<2x8x8xbf16>, vector<2x8x8xf32> -> vector<2x8x8xf32>
    "tpu.trace_stop"() : () -> ()
    %117 = vector.shape_cast %116 : vector<2x8x8xf32> to vector<16x8xf32>
    %118 = arith.truncf %117 : vector<16x8xf32> to vector<16x8xbf16>
    %c1_52 = arith.constant 1 : index
    %c0_53 = arith.constant 0 : index
    %c0_54 = arith.constant 0 : index
    %119 = vector.load %arg4[%c1_52, %c0_53, %c0_54] : memref<4x8x32xbf16, #tpu.memory_space<vmem>>, vector<1x8x32xbf16>
    %120 = vector.shape_cast %119 : vector<1x8x32xbf16> to vector<8x32xbf16>
    %cst_55 = arith.constant dense<0.000000e+00> : vector<16x32xf32>
    %121 = tpu.matmul %118, %120, %cst_55 {dimension_numbers = #tpu.dot_dimension_numbers<[1], [0], [0], [1], [0, 0, 1, 1], [], []>} : vector<16x8xbf16>, vector<8x32xbf16>, vector<16x32xf32> -> vector<16x32xf32>
    %122 = arith.addf %73, %121 : vector<16x32xf32>
    %c2_56 = arith.constant 2 : index
    %c0_57 = arith.constant 0 : index
    %c0_58 = arith.constant 0 : index
    %123 = vector.load %arg3[%c2_56, %c0_57, %c0_58] : memref<12x32x8xbf16, #tpu.memory_space<vmem>>, vector<1x32x8xbf16>
    %124 = vector.shape_cast %123 : vector<1x32x8xbf16> to vector<32x8xbf16>
    %c6_59 = arith.constant 6 : index
    %c0_60 = arith.constant 0 : index
    %c0_61 = arith.constant 0 : index
    %125 = vector.load %arg3[%c6_59, %c0_60, %c0_61] : memref<12x32x8xbf16, #tpu.memory_space<vmem>>, vector<1x32x8xbf16>
    %126 = vector.shape_cast %125 : vector<1x32x8xbf16> to vector<32x8xbf16>
    %c10 = arith.constant 10 : index
    %c0_62 = arith.constant 0 : index
    %c0_63 = arith.constant 0 : index
    %127 = vector.load %arg3[%c10, %c0_62, %c0_63] : memref<12x32x8xbf16, #tpu.memory_space<vmem>>, vector<1x32x8xbf16>
    %128 = vector.shape_cast %127 : vector<1x32x8xbf16> to vector<32x8xbf16>
    %cst_64 = arith.constant dense<0.000000e+00> : vector<16x8xf32>
    %129 = tpu.matmul %2, %124, %cst_64 {dimension_numbers = #tpu.dot_dimension_numbers<[1], [0], [0], [1], [0, 0, 1, 1], [], []>} : vector<16x32xbf16>, vector<32x8xbf16>, vector<16x8xf32> -> vector<16x8xf32>
    %130 = vector.extract_strided_slice %4 {offsets = [16], sizes = [8], strides = [1]} : vector<32xf32> to vector<8xf32>
    %131 = vector.shape_cast %130 : vector<8xf32> to vector<1x8xf32>
    %132 = vector.broadcast %131 : vector<1x8xf32> to vector<16x8xf32>
    %133 = arith.addf %129, %132 : vector<16x8xf32>
    %cst_65 = arith.constant dense<0.000000e+00> : vector<16x8xf32>
    %134 = tpu.matmul %2, %126, %cst_65 {dimension_numbers = #tpu.dot_dimension_numbers<[1], [0], [0], [1], [0, 0, 1, 1], [], []>} : vector<16x32xbf16>, vector<32x8xbf16>, vector<16x8xf32> -> vector<16x8xf32>
    %135 = vector.extract_strided_slice %6 {offsets = [16], sizes = [8], strides = [1]} : vector<32xf32> to vector<8xf32>
    %136 = vector.shape_cast %135 : vector<8xf32> to vector<1x8xf32>
    %137 = vector.broadcast %136 : vector<1x8xf32> to vector<16x8xf32>
    %138 = arith.addf %134, %137 : vector<16x8xf32>
    %cst_66 = arith.constant dense<0.000000e+00> : vector<16x8xf32>
    %139 = tpu.matmul %2, %128, %cst_66 {dimension_numbers = #tpu.dot_dimension_numbers<[1], [0], [0], [1], [0, 0, 1, 1], [], []>} : vector<16x32xbf16>, vector<32x8xbf16>, vector<16x8xf32> -> vector<16x8xf32>
    %140 = vector.extract_strided_slice %8 {offsets = [16], sizes = [8], strides = [1]} : vector<32xf32> to vector<8xf32>
    %141 = vector.shape_cast %140 : vector<8xf32> to vector<1x8xf32>
    %142 = vector.broadcast %141 : vector<1x8xf32> to vector<16x8xf32>
    %143 = arith.addf %139, %142 : vector<16x8xf32>
    %cst_67 = arith.constant 0.353553385 : f32
    %144 = vector.broadcast %cst_67 : f32 to vector<16x8xf32>
    %145 = arith.mulf %133, %144 : vector<16x8xf32>
    %146 = vector.shape_cast %145 : vector<16x8xf32> to vector<2x8x8xf32>
    %147 = arith.truncf %146 : vector<2x8x8xf32> to vector<2x8x8xbf16>
    %148 = vector.shape_cast %138 : vector<16x8xf32> to vector<2x8x8xf32>
    %149 = arith.truncf %148 : vector<2x8x8xf32> to vector<2x8x8xbf16>
    %150 = vector.shape_cast %143 : vector<16x8xf32> to vector<2x8x8xf32>
    %151 = arith.truncf %150 : vector<2x8x8xf32> to vector<2x8x8xbf16>
    "tpu.trace_start"() <{level = 10 : i32, message = "bqd,bkd->bqk"}> : () -> ()
    %cst_68 = arith.constant dense<0.000000e+00> : vector<2x8x8xf32>
    %152 = tpu.matmul %147, %149, %cst_68 {dimension_numbers = #tpu.dot_dimension_numbers<[2], [2], [1], [1], [0, 0, 0, 1, 1, 1], [0], [0]>} : vector<2x8x8xbf16>, vector<2x8x8xbf16>, vector<2x8x8xf32> -> vector<2x8x8xf32>
    "tpu.trace_stop"() : () -> ()
    %153 = arith.addf %152, %23 : vector<2x8x8xf32>
    %cst_69 = arith.constant dense<0xFF800000> : vector<2x8xf32>
    %154 = vector.multi_reduction <maximumf>, %153, %cst_69 [2] : vector<2x8x8xf32> to vector<2x8xf32>
    %155 = vector.shape_cast %154 : vector<2x8xf32> to vector<2x8x1xf32>
    %156 = vector.broadcast %155 : vector<2x8x1xf32> to vector<2x8x8xf32>
    %157 = arith.subf %153, %156 : vector<2x8x8xf32>
    %158 = math.exp %157 : vector<2x8x8xf32>
    %cst_70 = arith.constant dense<0.000000e+00> : vector<2x8xf32>
    %159 = vector.multi_reduction <add>, %158, %cst_70 [2] : vector<2x8x8xf32> to vector<2x8xf32>
    %160 = vector.shape_cast %159 : vector<2x8xf32> to vector<2x8x1xf32>
    %161 = tpu.reciprocal %160 {approx = true} : vector<2x8x1xf32> -> vector<2x8x1xf32>
    %162 = vector.broadcast %161 : vector<2x8x1xf32> to vector<2x8x8xf32>
    %163 = arith.mulf %158, %162 : vector<2x8x8xf32>
    %164 = arith.truncf %163 : vector<2x8x8xf32> to vector<2x8x8xbf16>
    "tpu.trace_start"() <{level = 10 : i32, message = "bqk,bkd->bqd"}> : () -> ()
    %cst_71 = arith.constant dense<0.000000e+00> : vector<2x8x8xf32>
    %165 = tpu.matmul %164, %151, %cst_71 {dimension_numbers = #tpu.dot_dimension_numbers<[2], [1], [1], [2], [0, 0, 0, 1, 1, 2], [0], [0]>} : vector<2x8x8xbf16>, vector<2x8x8xbf16>, vector<2x8x8xf32> -> vector<2x8x8xf32>
    "tpu.trace_stop"() : () -> ()
    %166 = vector.shape_cast %165 : vector<2x8x8xf32> to vector<16x8xf32>
    %167 = arith.truncf %166 : vector<16x8xf32> to vector<16x8xbf16>
    %c2_72 = arith.constant 2 : index
    %c0_73 = arith.constant 0 : index
    %c0_74 = arith.constant 0 : index
    %168 = vector.load %arg4[%c2_72, %c0_73, %c0_74] : memref<4x8x32xbf16, #tpu.memory_space<vmem>>, vector<1x8x32xbf16>
    %169 = vector.shape_cast %168 : vector<1x8x32xbf16> to vector<8x32xbf16>
    %cst_75 = arith.constant dense<0.000000e+00> : vector<16x32xf32>
    %170 = tpu.matmul %167, %169, %cst_75 {dimension_numbers = #tpu.dot_dimension_numbers<[1], [0], [0], [1], [0, 0, 1, 1], [], []>} : vector<16x8xbf16>, vector<8x32xbf16>, vector<16x32xf32> -> vector<16x32xf32>
    %171 = arith.addf %122, %170 : vector<16x32xf32>
    %c3_76 = arith.constant 3 : index
    %c0_77 = arith.constant 0 : index
    %c0_78 = arith.constant 0 : index
    %172 = vector.load %arg3[%c3_76, %c0_77, %c0_78] : memref<12x32x8xbf16, #tpu.memory_space<vmem>>, vector<1x32x8xbf16>
    %173 = vector.shape_cast %172 : vector<1x32x8xbf16> to vector<32x8xbf16>
    %c7_79 = arith.constant 7 : index
    %c0_80 = arith.constant 0 : index
    %c0_81 = arith.constant 0 : index
    %174 = vector.load %arg3[%c7_79, %c0_80, %c0_81] : memref<12x32x8xbf16, #tpu.memory_space<vmem>>, vector<1x32x8xbf16>
    %175 = vector.shape_cast %174 : vector<1x32x8xbf16> to vector<32x8xbf16>
    %c11 = arith.constant 11 : index
    %c0_82 = arith.constant 0 : index
    %c0_83 = arith.constant 0 : index
    %176 = vector.load %arg3[%c11, %c0_82, %c0_83] : memref<12x32x8xbf16, #tpu.memory_space<vmem>>, vector<1x32x8xbf16>
    %177 = vector.shape_cast %176 : vector<1x32x8xbf16> to vector<32x8xbf16>
    %cst_84 = arith.constant dense<0.000000e+00> : vector<16x8xf32>
    %178 = tpu.matmul %2, %173, %cst_84 {dimension_numbers = #tpu.dot_dimension_numbers<[1], [0], [0], [1], [0, 0, 1, 1], [], []>} : vector<16x32xbf16>, vector<32x8xbf16>, vector<16x8xf32> -> vector<16x8xf32>
    %179 = vector.extract_strided_slice %4 {offsets = [24], sizes = [8], strides = [1]} : vector<32xf32> to vector<8xf32>
    %180 = vector.shape_cast %179 : vector<8xf32> to vector<1x8xf32>
    %181 = vector.broadcast %180 : vector<1x8xf32> to vector<16x8xf32>
    %182 = arith.addf %178, %181 : vector<16x8xf32>
    %cst_85 = arith.constant dense<0.000000e+00> : vector<16x8xf32>
    %183 = tpu.matmul %2, %175, %cst_85 {dimension_numbers = #tpu.dot_dimension_numbers<[1], [0], [0], [1], [0, 0, 1, 1], [], []>} : vector<16x32xbf16>, vector<32x8xbf16>, vector<16x8xf32> -> vector<16x8xf32>
    %184 = vector.extract_strided_slice %6 {offsets = [24], sizes = [8], strides = [1]} : vector<32xf32> to vector<8xf32>
    %185 = vector.shape_cast %184 : vector<8xf32> to vector<1x8xf32>
    %186 = vector.broadcast %185 : vector<1x8xf32> to vector<16x8xf32>
    %187 = arith.addf %183, %186 : vector<16x8xf32>
    %cst_86 = arith.constant dense<0.000000e+00> : vector<16x8xf32>
    %188 = tpu.matmul %2, %177, %cst_86 {dimension_numbers = #tpu.dot_dimension_numbers<[1], [0], [0], [1], [0, 0, 1, 1], [], []>} : vector<16x32xbf16>, vector<32x8xbf16>, vector<16x8xf32> -> vector<16x8xf32>
    %189 = vector.extract_strided_slice %8 {offsets = [24], sizes = [8], strides = [1]} : vector<32xf32> to vector<8xf32>
    %190 = vector.shape_cast %189 : vector<8xf32> to vector<1x8xf32>
    %191 = vector.broadcast %190 : vector<1x8xf32> to vector<16x8xf32>
    %192 = arith.addf %188, %191 : vector<16x8xf32>
    %cst_87 = arith.constant 0.353553385 : f32
    %193 = vector.broadcast %cst_87 : f32 to vector<16x8xf32>
    %194 = arith.mulf %182, %193 : vector<16x8xf32>
    %195 = vector.shape_cast %194 : vector<16x8xf32> to vector<2x8x8xf32>
    %196 = arith.truncf %195 : vector<2x8x8xf32> to vector<2x8x8xbf16>
    %197 = vector.shape_cast %187 : vector<16x8xf32> to vector<2x8x8xf32>
    %198 = arith.truncf %197 : vector<2x8x8xf32> to vector<2x8x8xbf16>
    %199 = vector.shape_cast %192 : vector<16x8xf32> to vector<2x8x8xf32>
    %200 = arith.truncf %199 : vector<2x8x8xf32> to vector<2x8x8xbf16>
    "tpu.trace_start"() <{level = 10 : i32, message = "bqd,bkd->bqk"}> : () -> ()
    %cst_88 = arith.constant dense<0.000000e+00> : vector<2x8x8xf32>
    %201 = tpu.matmul %196, %198, %cst_88 {dimension_numbers = #tpu.dot_dimension_numbers<[2], [2], [1], [1], [0, 0, 0, 1, 1, 1], [0], [0]>} : vector<2x8x8xbf16>, vector<2x8x8xbf16>, vector<2x8x8xf32> -> vector<2x8x8xf32>
    "tpu.trace_stop"() : () -> ()
    %202 = arith.addf %201, %23 : vector<2x8x8xf32>
    %cst_89 = arith.constant dense<0xFF800000> : vector<2x8xf32>
    %203 = vector.multi_reduction <maximumf>, %202, %cst_89 [2] : vector<2x8x8xf32> to vector<2x8xf32>
    %204 = vector.shape_cast %203 : vector<2x8xf32> to vector<2x8x1xf32>
    %205 = vector.broadcast %204 : vector<2x8x1xf32> to vector<2x8x8xf32>
    %206 = arith.subf %202, %205 : vector<2x8x8xf32>
    %207 = math.exp %206 : vector<2x8x8xf32>
    %cst_90 = arith.constant dense<0.000000e+00> : vector<2x8xf32>
    %208 = vector.multi_reduction <add>, %207, %cst_90 [2] : vector<2x8x8xf32> to vector<2x8xf32>
    %209 = vector.shape_cast %208 : vector<2x8xf32> to vector<2x8x1xf32>
    %210 = tpu.reciprocal %209 {approx = true} : vector<2x8x1xf32> -> vector<2x8x1xf32>
    %211 = vector.broadcast %210 : vector<2x8x1xf32> to vector<2x8x8xf32>
    %212 = arith.mulf %207, %211 : vector<2x8x8xf32>
    %213 = arith.truncf %212 : vector<2x8x8xf32> to vector<2x8x8xbf16>
    "tpu.trace_start"() <{level = 10 : i32, message = "bqk,bkd->bqd"}> : () -> ()
    %cst_91 = arith.constant dense<0.000000e+00> : vector<2x8x8xf32>
    %214 = tpu.matmul %213, %200, %cst_91 {dimension_numbers = #tpu.dot_dimension_numbers<[2], [1], [1], [2], [0, 0, 0, 1, 1, 2], [0], [0]>} : vector<2x8x8xbf16>, vector<2x8x8xbf16>, vector<2x8x8xf32> -> vector<2x8x8xf32>
    "tpu.trace_stop"() : () -> ()
    %215 = vector.shape_cast %214 : vector<2x8x8xf32> to vector<16x8xf32>
    %216 = arith.truncf %215 : vector<16x8xf32> to vector<16x8xbf16>
    %c3_92 = arith.constant 3 : index
    %c0_93 = arith.constant 0 : index
    %c0_94 = arith.constant 0 : index
    %217 = vector.load %arg4[%c3_92, %c0_93, %c0_94] : memref<4x8x32xbf16, #tpu.memory_space<vmem>>, vector<1x8x32xbf16>
    %218 = vector.shape_cast %217 : vector<1x8x32xbf16> to vector<8x32xbf16>
    %cst_95 = arith.constant dense<0.000000e+00> : vector<16x32xf32>
    %219 = tpu.matmul %216, %218, %cst_95 {dimension_numbers = #tpu.dot_dimension_numbers<[1], [0], [0], [1], [0, 0, 1, 1], [], []>} : vector<16x8xbf16>, vector<8x32xbf16>, vector<16x32xf32> -> vector<16x32xf32>
    %220 = arith.addf %171, %219 : vector<16x32xf32>
    %221 = vector.shape_cast %10 : vector<32xf32> to vector<1x32xf32>
    %222 = vector.broadcast %221 : vector<1x32xf32> to vector<16x32xf32>
    %223 = arith.addf %220, %222 : vector<16x32xf32>
    %224 = arith.addf %1, %223 : vector<16x32xf32>
    %cst_96 = arith.constant dense<0.000000e+00> : vector<16xf32>
    %225 = vector.multi_reduction <add>, %224, %cst_96 [1] : vector<16x32xf32> to vector<16xf32>
    %226 = vector.shape_cast %225 : vector<16xf32> to vector<16x1xf32>
    %cst_97 = arith.constant 3.200000e+01 : f32
    %227 = vector.broadcast %cst_97 : f32 to vector<16x1xf32>
    %228 = arith.divf %226, %227 : vector<16x1xf32>
    %229 = vector.broadcast %228 : vector<16x1xf32> to vector<16x32xf32>
    %230 = arith.subf %224, %229 : vector<16x32xf32>
    %231 = arith.mulf %230, %230 : vector<16x32xf32>
    %cst_98 = arith.constant dense<0.000000e+00> : vector<16xf32>
    %232 = vector.multi_reduction <add>, %231, %cst_98 [1] : vector<16x32xf32> to vector<16xf32>
    %233 = vector.shape_cast %232 : vector<16xf32> to vector<16x1xf32>
    %cst_99 = arith.constant 3.200000e+01 : f32
    %234 = vector.broadcast %cst_99 : f32 to vector<16x1xf32>
    %235 = arith.divf %233, %234 : vector<16x1xf32>
    %236 = vector.broadcast %228 : vector<16x1xf32> to vector<16x32xf32>
    %237 = arith.subf %224, %236 : vector<16x32xf32>
    %cst_100 = arith.constant 9.99999974E-6 : f32
    %238 = vector.broadcast %cst_100 : f32 to vector<16x1xf32>
    %239 = arith.addf %235, %238 : vector<16x1xf32>
    %240 = math.rsqrt %239 : vector<16x1xf32>
    %241 = vector.broadcast %240 : vector<16x1xf32> to vector<16x32xf32>
    %242 = arith.mulf %237, %241 : vector<16x32xf32>
    %243 = vector.shape_cast %12 : vector<32xf32> to vector<1x32xf32>
    %244 = vector.broadcast %243 : vector<1x32xf32> to vector<16x32xf32>
    %245 = arith.mulf %242, %244 : vector<16x32xf32>
    %246 = vector.shape_cast %14 : vector<32xf32> to vector<1x32xf32>
    %247 = vector.broadcast %246 : vector<1x32xf32> to vector<16x32xf32>
    %248 = arith.addf %245, %247 : vector<16x32xf32>
    %c0_101 = arith.constant 0 : index
    %c0_102 = arith.constant 0 : index
    %249 = vector.load %arg8[%c0_101, %c0_102] : memref<1x128xf32, #tpu.memory_space<vmem>>, vector<1x128xf32>
    %250 = vector.shape_cast %249 : vector<1x128xf32> to vector<128xf32>
    %251 = arith.truncf %248 : vector<16x32xf32> to vector<16x32xbf16>
    %c0_103 = arith.constant 0 : index
    %c0_104 = arith.constant 0 : index
    %252 = vector.load %arg5[%c0_103, %c0_104] : memref<32x128xbf16, #tpu.memory_space<vmem>>, vector<32x128xbf16>
    %cst_105 = arith.constant dense<0.000000e+00> : vector<16x128xf32>
    %253 = tpu.matmul %251, %252, %cst_105 {dimension_numbers = #tpu.dot_dimension_numbers<[1], [0], [0], [1], [0, 0, 1, 1], [], []>} : vector<16x32xbf16>, vector<32x128xbf16>, vector<16x128xf32> -> vector<16x128xf32>
    %254 = vector.shape_cast %250 : vector<128xf32> to vector<1x128xf32>
    %255 = vector.broadcast %254 : vector<1x128xf32> to vector<16x128xf32>
    %256 = arith.addf %253, %255 : vector<16x128xf32>
    %cst_106 = arith.constant 0.000000e+00 : f32
    %257 = vector.broadcast %cst_106 : f32 to vector<16x128xf32>
    %258 = arith.maximumf %256, %257 : vector<16x128xf32>
    %259 = arith.truncf %258 : vector<16x128xf32> to vector<16x128xbf16>
    %c0_107 = arith.constant 0 : index
    %c0_108 = arith.constant 0 : index
    %260 = vector.load %arg6[%c0_107, %c0_108] : memref<128x32xbf16, #tpu.memory_space<vmem>>, vector<128x32xbf16>
    %cst_109 = arith.constant dense<0.000000e+00> : vector<16x32xf32>
    %261 = tpu.matmul %259, %260, %cst_109 {dimension_numbers = #tpu.dot_dimension_numbers<[1], [0], [0], [1], [0, 0, 1, 1], [], []>} : vector<16x128xbf16>, vector<128x32xbf16>, vector<16x32xf32> -> vector<16x32xf32>
    %262 = vector.shape_cast %16 : vector<32xf32> to vector<1x32xf32>
    %263 = vector.broadcast %262 : vector<1x32xf32> to vector<16x32xf32>
    %264 = arith.addf %261, %263 : vector<16x32xf32>
    %265 = arith.addf %248, %264 : vector<16x32xf32>
    %cst_110 = arith.constant dense<0.000000e+00> : vector<16xf32>
    %266 = vector.multi_reduction <add>, %265, %cst_110 [1] : vector<16x32xf32> to vector<16xf32>
    %267 = vector.shape_cast %266 : vector<16xf32> to vector<16x1xf32>
    %cst_111 = arith.constant 3.200000e+01 : f32
    %268 = vector.broadcast %cst_111 : f32 to vector<16x1xf32>
    %269 = arith.divf %267, %268 : vector<16x1xf32>
    %270 = vector.broadcast %269 : vector<16x1xf32> to vector<16x32xf32>
    %271 = arith.subf %265, %270 : vector<16x32xf32>
    %272 = arith.mulf %271, %271 : vector<16x32xf32>
    %cst_112 = arith.constant dense<0.000000e+00> : vector<16xf32>
    %273 = vector.multi_reduction <add>, %272, %cst_112 [1] : vector<16x32xf32> to vector<16xf32>
    %274 = vector.shape_cast %273 : vector<16xf32> to vector<16x1xf32>
    %cst_113 = arith.constant 3.200000e+01 : f32
    %275 = vector.broadcast %cst_113 : f32 to vector<16x1xf32>
    %276 = arith.divf %274, %275 : vector<16x1xf32>
    %277 = vector.broadcast %269 : vector<16x1xf32> to vector<16x32xf32>
    %278 = arith.subf %265, %277 : vector<16x32xf32>
    %cst_114 = arith.constant 9.99999974E-6 : f32
    %279 = vector.broadcast %cst_114 : f32 to vector<16x1xf32>
    %280 = arith.addf %276, %279 : vector<16x1xf32>
    %281 = math.rsqrt %280 : vector<16x1xf32>
    %282 = vector.broadcast %281 : vector<16x1xf32> to vector<16x32xf32>
    %283 = arith.mulf %278, %282 : vector<16x32xf32>
    %284 = vector.shape_cast %18 : vector<32xf32> to vector<1x32xf32>
    %285 = vector.broadcast %284 : vector<1x32xf32> to vector<16x32xf32>
    %286 = arith.mulf %283, %285 : vector<16x32xf32>
    %287 = vector.shape_cast %20 : vector<32xf32> to vector<1x32xf32>
    %288 = vector.broadcast %287 : vector<1x32xf32> to vector<16x32xf32>
    %289 = arith.addf %286, %288 : vector<16x32xf32>
    %290 = vector.shape_cast %289 : vector<16x32xf32> to vector<2x8x32xf32>
    %c0_115 = arith.constant 0 : index
    %c0_116 = arith.constant 0 : index
    %c0_117 = arith.constant 0 : index
    %291 = vector.load %arg9[%c0_115, %c0_116, %c0_117] : memref<2x8x32xf32, #tpu.memory_space<vmem>>, vector<2x8x32xf32>
    tpu.vector_store %arg9[%c0_115, %c0_116, %c0_117], %290 {strides = array<i32>} : memref<2x8x32xf32, #tpu.memory_space<vmem>>, vector<2x8x32xf32>,
    return
  }
  func.func @transform_0(%arg0: i32) -> (i32, i32, i32) {
    %c0_i32 = arith.constant 0 : i32
    %c0_i32_0 = arith.constant 0 : i32
    %c0_i32_1 = arith.constant 0 : i32
    return %arg0, %c0_i32, %c0_i32_0 : i32, i32, i32
  }
  func.func @transform_1(%arg0: i32) -> (i32, i32, i32) {
    %c0_i32 = arith.constant 0 : i32
    %c0_i32_0 = arith.constant 0 : i32
    %c0_i32_1 = arith.constant 0 : i32
    return %arg0, %c0_i32, %c0_i32_0 : i32, i32, i32
  }
  func.func @transform_2(%arg0: i32) -> (i32, i32, i32) {
    %c0_i32 = arith.constant 0 : i32
    %c0_i32_0 = arith.constant 0 : i32
    %c0_i32_1 = arith.constant 0 : i32
    %c0_i32_2 = arith.constant 0 : i32
    return %c0_i32, %c0_i32_0, %c0_i32_1 : i32, i32, i32
  }
  func.func @transform_3(%arg0: i32) -> (i32, i32, i32) {
    %c0_i32 = arith.constant 0 : i32
    %c0_i32_0 = arith.constant 0 : i32
    %c0_i32_1 = arith.constant 0 : i32
    %c0_i32_2 = arith.constant 0 : i32
    return %c0_i32, %c0_i32_0, %c0_i32_1 : i32, i32, i32
  }
  func.func @transform_4(%arg0: i32) -> (i32, i32) {
    %c0_i32 = arith.constant 0 : i32
    %c0_i32_0 = arith.constant 0 : i32
    %c0_i32_1 = arith.constant 0 : i32
    return %c0_i32, %c0_i32_0 : i32, i32
  }
  func.func @transform_5(%arg0: i32) -> (i32, i32) {
    %c0_i32 = arith.constant 0 : i32
    %c0_i32_0 = arith.constant 0 : i32
    %c0_i32_1 = arith.constant 0 : i32
    return %c0_i32, %c0_i32_0 : i32, i32
  }
  func.func @transform_6(%arg0: i32) -> (i32, i32) {
    %c0_i32 = arith.constant 0 : i32
    %c0_i32_0 = arith.constant 0 : i32
    %c0_i32_1 = arith.constant 0 : i32
    return %c0_i32, %c0_i32_0 : i32, i32
  }
  func.func @transform_7(%arg0: i32) -> (i32, i32) {
    %c0_i32 = arith.constant 0 : i32
    %c0_i32_0 = arith.constant 0 : i32
    %c0_i32_1 = arith.constant 0 : i32
    return %c0_i32, %c0_i32_0 : i32, i32
  }
  func.func @transform_8(%arg0: i32) -> (i32, i32, i32) {
    %c0_i32 = arith.constant 0 : i32
    %c0_i32_0 = arith.constant 0 : i32
    %c0_i32_1 = arith.constant 0 : i32
    return %arg0, %c0_i32, %c0_i32_0 : i32, i32, i32
  }
}

</mosaic_0001>

<llo_original>
// kernel: tpu_custom_call.1
$region0: #{tpu_custom_call.1}
  #allocation0 [shape = 'u32[]', space=smem, size = 0x4, offset = 0x4, fixed_abs, tag = 'smem constant byte address 0x4 - core index']
  #allocation1 [shape = 'u32[144,128]{1,0:T(1,128)}', space=vmem, size = 0x12000, scoped, tag = 'internal scratch']
  %s0 = inlined_call_operand.vmem [shape: f32[2,8,32], index: 0, kind: input, shape index: {}]
  %s1 = inlined_call_operand.vmem [shape: f32[2,1,8], index: 1, kind: input, shape index: {}]
  %s2 = inlined_call_operand.vmem [shape: bf16[12,32,8], index: 2, kind: input, shape index: {}]
  %s3 = inlined_call_operand.vmem [shape: bf16[4,8,32], index: 3, kind: input, shape index: {}]
  %s4 = inlined_call_operand.vmem [shape: bf16[32,128], index: 4, kind: input, shape index: {}]
  %s5 = inlined_call_operand.vmem [shape: bf16[128,32], index: 5, kind: input, shape index: {}]
  %s6 = inlined_call_operand.vmem [shape: f32[16,32], index: 6, kind: input, shape index: {}]
  %s7 = inlined_call_operand.vmem [shape: f32[1,128], index: 7, kind: input, shape index: {}]
  %s8 = inlined_call_operand.hbm [shape: f32[2,8,32], index: 8, kind: output, shape index: {}]
  %s9 = sld [smem:[#allocation0]]
  $region42: #{tpu_custom_call.1} parent=0
    _
  %s11 = ssub.s32 1, %s9
  %s12 = scalar_select 0, %s11, %s9
  $region1: #{tpu_custom_call.1} parent=0
    #allocation2 [shape = 'u8[8192]{0}', space=vmem, size = 0x2000, scoped, tag = 'output window, operand 0, single buffered']
    #allocation3 [shape = 's32[1]{0}', space=sflag, size = 0x4, scoped, tag = 'scoped memory for tpu_custom_call.1']
    %13 = vsyncpa [#allocation3], 0
    // Predicated region
    $region2: #{tpu_custom_call.1} parent=1 // pred_check
      _
    $region3: #{tpu_custom_call.1} parent=1 // pred_check_branch
      %15 = sbr.rel (0) target = $region5
    $region4: #{tpu_custom_call.1} parent=1 // pred_region
      _
    $region5: #{tpu_custom_call.1} parent=1 // pred_fallthru
      _
    // Predicated region
    $region6: #{tpu_custom_call.1} parent=1 // pred_check
      _
    $region7: #{tpu_custom_call.1} parent=1 // pred_check_branch
      %17 = sbr.rel (0) target = $region9
    $region8: #{tpu_custom_call.1} parent=1 // pred_region
      _
    $region9: #{tpu_custom_call.1} parent=1 // pred_fallthru
      _
    // Predicated region
    $region10: #{tpu_custom_call.1} parent=1 // pred_check
      _
    $region11: #{tpu_custom_call.1} parent=1 // pred_check_branch
      %19 = sbr.rel (0) target = $region13
    $region12: #{tpu_custom_call.1} parent=1 // pred_region
      _
    $region13: #{tpu_custom_call.1} parent=1 // pred_fallthru
      _
    // Predicated region
    $region14: #{tpu_custom_call.1} parent=1 // pred_check
      _
    $region15: #{tpu_custom_call.1} parent=1 // pred_check_branch
      %21 = sbr.rel (0) target = $region17
    $region16: #{tpu_custom_call.1} parent=1 // pred_region
      _
    $region17: #{tpu_custom_call.1} parent=1 // pred_fallthru
      _
    // Predicated region
    $region18: #{tpu_custom_call.1} parent=1 // pred_check
      _
    $region19: #{tpu_custom_call.1} parent=1 // pred_check_branch
      %23 = sbr.rel (0) target = $region21
    $region20: #{tpu_custom_call.1} parent=1 // pred_region
      _
    $region21: #{tpu_custom_call.1} parent=1 // pred_fallthru
      _
    // Predicated region
    $region22: #{tpu_custom_call.1} parent=1 // pred_check
      _
    $region23: #{tpu_custom_call.1} parent=1 // pred_check_branch
      %25 = sbr.rel (0) target = $region25
    $region24: #{tpu_custom_call.1} parent=1 // pred_region
      _
    $region25: #{tpu_custom_call.1} parent=1 // pred_fallthru
      _
    // Predicated region
    $region26: #{tpu_custom_call.1} parent=1 // pred_check
      _
    $region27: #{tpu_custom_call.1} parent=1 // pred_check_branch
      %27 = sbr.rel (0) target = $region29
    $region28: #{tpu_custom_call.1} parent=1 // pred_region
      _
    $region29: #{tpu_custom_call.1} parent=1 // pred_fallthru
      _
    // Predicated region
    $region30: #{tpu_custom_call.1} parent=1 // pred_check
      _
    $region31: #{tpu_custom_call.1} parent=1 // pred_check_branch
      %29 = sbr.rel (0) target = $region33
    $region32: #{tpu_custom_call.1} parent=1 // pred_region
      _
    $region33: #{tpu_custom_call.1} parent=1 // pred_fallthru
      _
    %v31 = vld [vmem:[%s0] sm:$0xff]
    %v32 = vld [vmem:[%s0 + $0x8] sm:$0xff]
    %v33 = vpack.c.bf16 %v32, %v31
    %v34 = vld [vmem:[%s6] sm:$0x1]
    %v35 = vld [vmem:[%s6 + $0x1] sm:$0x1]
    %v36 = vld [vmem:[%s6 + $0x2] sm:$0x1]
    %v37 = vld [vmem:[%s6 + $0x3] sm:$0x1]
    %v38 = vld [vmem:[%s6 + $0x4] sm:$0x1]
    %v39 = vld [vmem:[%s6 + $0x5] sm:$0x1]
    %v40 = vld [vmem:[%s6 + $0x6] sm:$0x1]
    %v41 = vld [vmem:[%s6 + $0x7] sm:$0x1]
    %v42 = vld [vmem:[%s6 + $0x8] sm:$0x1]
    %v43 = vld [vmem:[%s1] sm:$0x1]
    %v44 = vld [vmem:[%s1 + $0x1] sm:$0x1]
    %v47 = vlaneseq
    %v48 = vshrl.u32 %v47, 7
    %v49 = vsub.s32 0, %v48
    %v50 = vrot.slane %v43, %v49
    %v51 = vlaneseq
    %v52 = vshrl.u32 %v51, 7
    %v53 = vsub.s32 0, %v52
    %v54 = vrot.slane %v44, %v53
    %v57 = vld [vmem:[%s2] sm:$0xf]
    %v58 = vld [vmem:[%s2 + $0x4] sm:$0xf]
    %v59 = vld [vmem:[%s2 + $0x8] sm:$0xf]
    %v60 = vld [vmem:[%s2 + $0xc] sm:$0xf]
    %s61 = scalar_lea.vmem %s2, 64
    %v62 = vld [vmem:[%s61] sm:$0xf]
    %v63 = vld [vmem:[%s61 + $0x4] sm:$0xf]
    %v64 = vld [vmem:[%s61 + $0x8] sm:$0xf]
    %v65 = vld [vmem:[%s61 + $0xc] sm:$0xf]
    %s66 = scalar_lea.vmem %s2, 128
    %v67 = vld [vmem:[%s66] sm:$0xf]
    %v68 = vld [vmem:[%s66 + $0x4] sm:$0xf]
    %v69 = vld [vmem:[%s66 + $0x8] sm:$0xf]
    %v70 = vld [vmem:[%s66 + $0xc] sm:$0xf]
    %v71 = vlaneseq
    %v72 = vshrl.u32 %v71, 7
    %v73 = vsub.s32 0, %v72
    %v74 = vrot.slane %v34, %v73
    %v79 = vunpack.c.l.b16 %v57
    %v80 = vunpack.c.l.b16 %v58
    %v81 = vunpack.c.l.b16 %v59
    %v82 = vunpack.c.l.b16 %v60
    %v83 = vpack.c.b16 %v80, %v79
    %v84 = vpack.c.b16 %v82, %v81
    %vm87 = vcmask 261120
    %v89 = vsel %vm87, %v33, 0
    %91 = vmatprep.subr.bf16.mxu0 0
    %92 = vmatpush1.bf16.msra.mxu0 %v83
    %93 = vmatprep.subr.bf16.mxu0 0
    %94 = vmatpush1.bf16.msra.mxu0 %v84
    %95 = vmatprep.subr.bf16.mxu0 0
    %96 = vmatpush1.bf16.msra.mxu0 0
    %97 = vmatprep.subr.bf16.mxu0 0
    %98 = vmatpush1.bf16.msra.mxu0 0
    %99 = vmatprep.subr.bf16.mxu0 0
    %100 = vmatpush1.bf16.msra.mxu0 0
    %101 = vmatprep.subr.bf16.mxu0 0
    %102 = vmatpush1.bf16.msra.mxu0 0
    %103 = vmatprep.subr.bf16.mxu0 0
    %104 = vmatpush1.bf16.msra.mxu0 0
    %105 = vmatprep.subr.bf16.mxu0 0
    %106 = vmatpush1.bf16.msra.mxu0 0
    %107 = vmatprep.subr.bf16.mxu0 0
    %108 = vmatpush1.bf16.msra.mxu0 0
    %109 = vmatprep.subr.bf16.mxu0 0
    %110 = vmatpush1.bf16.msra.mxu0 0
    %111 = vmatprep.subr.bf16.mxu0 0
    %112 = vmatpush1.bf16.msra.mxu0 0
    %113 = vmatprep.subr.bf16.mxu0 0
    %114 = vmatpush1.bf16.msra.mxu0 0
    %115 = vmatprep.subr.bf16.mxu0 0
    %116 = vmatpush1.bf16.msra.mxu0 0
    %117 = vmatprep.subr.bf16.mxu0 0
    %118 = vmatpush1.bf16.msra.mxu0 0
    %119 = vmatprep.subr.bf16.mxu0 0
    %120 = vmatpush1.bf16.msra.mxu0 0
    %121 = vmatprep.subr.bf16.mxu0 0
    %122 = vmatpush1.bf16.msra.mxu0 0
    %123 = vmatprep.mubr.bf16.mxu0 0
    %124 = vmatmul.mubr.bf16.gmra.mrb[0].mxu0 %v89
    %v125 = vpop.f32.mrb[0].mxu0
    %v126 = vadd.f32 %v74, %v125
    %v127 = vpop.f32.mrb[0].mxu0
    %v128 = vpop.f32.mrb[0].mxu0
    %v129 = vadd.f32 %v74, %v128
    %v130 = vpop.f32.mrb[0].mxu0
    %131 = vdwg.mxu0
    %v132 = vlaneseq
    %v133 = vshrl.u32 %v132, 7
    %v134 = vsub.s32 0, %v133
    %v135 = vrot.slane %v35, %v134
    %v140 = vunpack.c.l.b16 %v62
    %v141 = vunpack.c.l.b16 %v63
    %v142 = vunpack.c.l.b16 %v64
    %v143 = vunpack.c.l.b16 %v65
    %v144 = vpack.c.b16 %v141, %v140
    %v145 = vpack.c.b16 %v143, %v142
    %148 = vmatprep.subr.bf16.mxu0 0
    %149 = vmatpush1.bf16.msra.mxu0 %v144
    %150 = vmatprep.subr.bf16.mxu0 0
    %151 = vmatpush1.bf16.msra.mxu0 %v145
    %152 = vmatprep.subr.bf16.mxu0 0
    %153 = vmatpush1.bf16.msra.mxu0 0
    %154 = vmatprep.subr.bf16.mxu0 0
    %155 = vmatpush1.bf16.msra.mxu0 0
    %156 = vmatprep.subr.bf16.mxu0 0
    %157 = vmatpush1.bf16.msra.mxu0 0
    %158 = vmatprep.subr.bf16.mxu0 0
    %159 = vmatpush1.bf16.msra.mxu0 0
    %160 = vmatprep.subr.bf16.mxu0 0
    %161 = vmatpush1.bf16.msra.mxu0 0
    %162 = vmatprep.subr.bf16.mxu0 0
    %163 = vmatpush1.bf16.msra.mxu0 0
    %164 = vmatprep.subr.bf16.mxu0 0
    %165 = vmatpush1.bf16.msra.mxu0 0
    %166 = vmatprep.subr.bf16.mxu0 0
    %167 = vmatpush1.bf16.msra.mxu0 0
    %168 = vmatprep.subr.bf16.mxu0 0
    %169 = vmatpush1.bf16.msra.mxu0 0
    %170 = vmatprep.subr.bf16.mxu0 0
    %171 = vmatpush1.bf16.msra.mxu0 0
    %172 = vmatprep.subr.bf16.mxu0 0
    %173 = vmatpush1.bf16.msra.mxu0 0
    %174 = vmatprep.subr.bf16.mxu0 0
    %175 = vmatpush1.bf16.msra.mxu0 0
    %176 = vmatprep.subr.bf16.mxu0 0
    %177 = vmatpush1.bf16.msra.mxu0 0
    %178 = vmatprep.subr.bf16.mxu0 0
    %179 = vmatpush1.bf16.msra.mxu0 0
    %180 = vmatprep.mubr.bf16.mxu0 0
    %181 = vmatmul.mubr.bf16.gmra.mrb[0].mxu0 %v89
    %v182 = vpop.f32.mrb[0].mxu0
    %v183 = vadd.f32 %v135, %v182
    %v184 = vpop.f32.mrb[0].mxu0
    %v185 = vpop.f32.mrb[0].mxu0
    %v186 = vadd.f32 %v135, %v185
    %v187 = vpop.f32.mrb[0].mxu0
    %188 = vdwg.mxu0
    %v189 = vlaneseq
    %v190 = vshrl.u32 %v189, 7
    %v191 = vsub.s32 0, %v190
    %v192 = vrot.slane %v36, %v191
    %v197 = vunpack.c.l.b16 %v67
    %v198 = vunpack.c.l.b16 %v68
    %v199 = vunpack.c.l.b16 %v69
    %v200 = vunpack.c.l.b16 %v70
    %v201 = vpack.c.b16 %v198, %v197
    %v202 = vpack.c.b16 %v200, %v199
    %205 = vmatprep.subr.bf16.mxu0 0
    %206 = vmatpush1.bf16.msra.mxu0 %v201
    %207 = vmatprep.subr.bf16.mxu0 0
    %208 = vmatpush1.bf16.msra.mxu0 %v202
    %209 = vmatprep.subr.bf16.mxu0 0
    %210 = vmatpush1.bf16.msra.mxu0 0
    %211 = vmatprep.subr.bf16.mxu0 0
    %212 = vmatpush1.bf16.msra.mxu0 0
    %213 = vmatprep.subr.bf16.mxu0 0
    %214 = vmatpush1.bf16.msra.mxu0 0
    %215 = vmatprep.subr.bf16.mxu0 0
    %216 = vmatpush1.bf16.msra.mxu0 0
    %217 = vmatprep.subr.bf16.mxu0 0
    %218 = vmatpush1.bf16.msra.mxu0 0
    %219 = vmatprep.subr.bf16.mxu0 0
    %220 = vmatpush1.bf16.msra.mxu0 0
    %221 = vmatprep.subr.bf16.mxu0 0
    %222 = vmatpush1.bf16.msra.mxu0 0
    %223 = vmatprep.subr.bf16.mxu0 0
    %224 = vmatpush1.bf16.msra.mxu0 0
    %225 = vmatprep.subr.bf16.mxu0 0
    %226 = vmatpush1.bf16.msra.mxu0 0
    %227 = vmatprep.subr.bf16.mxu0 0
    %228 = vmatpush1.bf16.msra.mxu0 0
    %229 = vmatprep.subr.bf16.mxu0 0
    %230 = vmatpush1.bf16.msra.mxu0 0
    %231 = vmatprep.subr.bf16.mxu0 0
    %232 = vmatpush1.bf16.msra.mxu0 0
    %233 = vmatprep.subr.bf16.mxu0 0
    %234 = vmatpush1.bf16.msra.mxu0 0
    %235 = vmatprep.subr.bf16.mxu0 0
    %236 = vmatpush1.bf16.msra.mxu0 0
    %237 = vmatprep.mubr.bf16.mxu0 0
    %238 = vmatmul.mubr.bf16.gmra.mrb[0].mxu0 %v89
    %v239 = vpop.f32.mrb[0].mxu0
    %v240 = vadd.f32 %v192, %v239
    %v241 = vpop.f32.mrb[0].mxu0
    %v242 = vpop.f32.mrb[0].mxu0
    %v243 = vadd.f32 %v192, %v242
    %v244 = vpop.f32.mrb[0].mxu0
    %245 = vdwg.mxu0
    %v246 = vmul.f32 %v126, 0.35355338
    %v247 = vmul.f32 %v129, 0.35355338
    %v248 = vpack.c.bf16 %v246, %v246
    %v249 = vpack.c.bf16 %v247, %v247
    %v250 = vpack.c.bf16 %v183, %v183
    %v251 = vpack.c.bf16 %v186, %v186
    %v252 = vpack.c.bf16 %v240, %v240
    %v253 = vpack.c.bf16 %v243, %v243
    %vm254 = vcmask 64512
    %v256 = vsel %vm254, %v248, 0
    %v259 = vsel %vm254, %v250, 0
    %261 = vmatprep.subr.bf16.mxu0 0
    %262 = vmatpush1.bf16.xpose.msra.mxu0 %v259
    %263 = vmatprep.subr.bf16.mxu0 0
    %264 = vmatpush1.bf16.xpose.msra.mxu0 0
    %265 = vmatprep.subr.bf16.mxu0 0
    %266 = vmatpush1.bf16.xpose.msra.mxu0 0
    %267 = vmatprep.subr.bf16.mxu0 0
    %268 = vmatpush1.bf16.xpose.msra.mxu0 0
    %269 = vmatprep.subr.bf16.mxu0 0
    %270 = vmatpush1.bf16.xpose.msra.mxu0 0
    %271 = vmatprep.subr.bf16.mxu0 0
    %272 = vmatpush1.bf16.xpose.msra.mxu0 0
    %273 = vmatprep.subr.bf16.mxu0 0
    %274 = vmatpush1.bf16.xpose.msra.mxu0 0
    %275 = vmatprep.subr.bf16.mxu0 0
    %276 = vmatpush1.bf16.xpose.msra.mxu0 0
    %277 = vmatprep.subr.bf16.mxu0 0
    %278 = vmatpush1.bf16.xpose.msra.mxu0 0
    %279 = vmatprep.subr.bf16.mxu0 0
    %280 = vmatpush1.bf16.xpose.msra.mxu0 0
    %281 = vmatprep.subr.bf16.mxu0 0
    %282 = vmatpush1.bf16.xpose.msra.mxu0 0
    %283 = vmatprep.subr.bf16.mxu0 0
    %284 = vmatpush1.bf16.xpose.msra.mxu0 0
    %285 = vmatprep.subr.bf16.mxu0 0
    %286 = vmatpush1.bf16.xpose.msra.mxu0 0
    %287 = vmatprep.subr.bf16.mxu0 0
    %288 = vmatpush1.bf16.xpose.msra.mxu0 0
    %289 = vmatprep.subr.bf16.mxu0 0
    %290 = vmatpush1.bf16.xpose.msra.mxu0 0
    %291 = vmatprep.subr.bf16.mxu0 0
    %292 = vmatpush1.bf16.xpose.msra.mxu0 0
    %293 = vmatprep.mubr.bf16.mxu0 0
    %294 = vmatmul.mubr.bf16.gmra.mrb[0].mxu0 %v256
    %v295 = vpop.f32.mrb[0].mxu0
    %v296 = vadd.f32 %v50, %v295
    %v297 = vpop.f32.mrb[0].mxu0
    %v298 = vpop.f32.mrb[0].mxu0
    %v299 = vpop.f32.mrb[0].mxu0
    %300 = vdwg.mxu0
    %v302 = vsel %vm254, %v249, 0
    %v305 = vsel %vm254, %v251, 0
    %307 = vmatprep.subr.bf16.mxu0 0
    %308 = vmatpush1.bf16.xpose.msra.mxu0 %v305
    %309 = vmatprep.subr.bf16.mxu0 0
    %310 = vmatpush1.bf16.xpose.msra.mxu0 0
    %311 = vmatprep.subr.bf16.mxu0 0
    %312 = vmatpush1.bf16.xpose.msra.mxu0 0
    %313 = vmatprep.subr.bf16.mxu0 0
    %314 = vmatpush1.bf16.xpose.msra.mxu0 0
    %315 = vmatprep.subr.bf16.mxu0 0
    %316 = vmatpush1.bf16.xpose.msra.mxu0 0
    %317 = vmatprep.subr.bf16.mxu0 0
    %318 = vmatpush1.bf16.xpose.msra.mxu0 0
    %319 = vmatprep.subr.bf16.mxu0 0
    %320 = vmatpush1.bf16.xpose.msra.mxu0 0
    %321 = vmatprep.subr.bf16.mxu0 0
    %322 = vmatpush1.bf16.xpose.msra.mxu0 0
    %323 = vmatprep.subr.bf16.mxu0 0
    %324 = vmatpush1.bf16.xpose.msra.mxu0 0
    %325 = vmatprep.subr.bf16.mxu0 0
    %326 = vmatpush1.bf16.xpose.msra.mxu0 0
    %327 = vmatprep.subr.bf16.mxu0 0
    %328 = vmatpush1.bf16.xpose.msra.mxu0 0
    %329 = vmatprep.subr.bf16.mxu0 0
    %330 = vmatpush1.bf16.xpose.msra.mxu0 0
    %331 = vmatprep.subr.bf16.mxu0 0
    %332 = vmatpush1.bf16.xpose.msra.mxu0 0
    %333 = vmatprep.subr.bf16.mxu0 0
    %334 = vmatpush1.bf16.xpose.msra.mxu0 0
    %335 = vmatprep.subr.bf16.mxu0 0
    %336 = vmatpush1.bf16.xpose.msra.mxu0 0
    %337 = vmatprep.subr.bf16.mxu0 0
    %338 = vmatpush1.bf16.xpose.msra.mxu0 0
    %339 = vmatprep.mubr.bf16.mxu0 0
    %340 = vmatmul.mubr.bf16.gmra.mrb[0].mxu0 %v302
    %v341 = vpop.f32.mrb[0].mxu0
    %v342 = vadd.f32 %v54, %v341
    %v343 = vpop.f32.mrb[0].mxu0
    %v344 = vpop.f32.mrb[0].mxu0
    %v345 = vpop.f32.mrb[0].mxu0
    %346 = vdwg.mxu0
    %v347 = vsel %vm254, %v296, -inf
    %348 = vmax.xlane.f32.xlu0 %v347
    %v349 = vpop.xlane.xlu0 %348
    %v350 = vsel %vm254, %v342, -inf
    %351 = vmax.xlane.f32.xlu0 %v350
    %v352 = vpop.xlane.xlu0 %351
    %v353 = vsub.f32 %v296, %v349
    %v354 = vsub.f32 %v342, %v352
    %v355 = vmul.f32 %v353, 1.442695
    %v356 = vpow.pop %v355
    %v357 = vmul.f32 %v354, 1.442695
    %v358 = vpow.pop %v357
    %v359 = vsel %vm254, %v356, 0.0
    %360 = vadd.xlane.f32.xlu0 %v359
    %v361 = vpop.xlane.xlu0 %360
    %v362 = vsel %vm254, %v358, 0.0
    %363 = vadd.xlane.f32.xlu0 %v362
    %v364 = vpop.xlane.xlu0 %363
    %v365 = vrcp.pop %v361
    %v366 = vrcp.pop %v364
    %v367 = vmul.f32 %v356, %v365
    %v368 = vmul.f32 %v358, %v366
    %v369 = vpack.c.bf16 %v367, %v367
    %v370 = vpack.c.bf16 %v368, %v368
    %v372 = vsel %vm254, %v369, 0
    %vm374 = vcmask 1043456
    %v376 = vsel %vm374, %v252, 0
    %378 = vmatprep.subr.bf16.mxu0 0
    %379 = vmatpush1.bf16.msra.mxu0 %v376
    %380 = vmatprep.subr.bf16.mxu0 0
    %381 = vmatpush1.bf16.msra.mxu0 0
    %382 = vmatprep.subr.bf16.mxu0 0
    %383 = vmatpush1.bf16.msra.mxu0 0
    %384 = vmatprep.subr.bf16.mxu0 0
    %385 = vmatpush1.bf16.msra.mxu0 0
    %386 = vmatprep.subr.bf16.mxu0 0
    %387 = vmatpush1.bf16.msra.mxu0 0
    %388 = vmatprep.subr.bf16.mxu0 0
    %389 = vmatpush1.bf16.msra.mxu0 0
    %390 = vmatprep.subr.bf16.mxu0 0
    %391 = vmatpush1.bf16.msra.mxu0 0
    %392 = vmatprep.subr.bf16.mxu0 0
    %393 = vmatpush1.bf16.msra.mxu0 0
    %394 = vmatprep.subr.bf16.mxu0 0
    %395 = vmatpush1.bf16.msra.mxu0 0
    %396 = vmatprep.subr.bf16.mxu0 0
    %397 = vmatpush1.bf16.msra.mxu0 0
    %398 = vmatprep.subr.bf16.mxu0 0
    %399 = vmatpush1.bf16.msra.mxu0 0
    %400 = vmatprep.subr.bf16.mxu0 0
    %401 = vmatpush1.bf16.msra.mxu0 0
    %402 = vmatprep.subr.bf16.mxu0 0
    %403 = vmatpush1.bf16.msra.mxu0 0
    %404 = vmatprep.subr.bf16.mxu0 0
    %405 = vmatpush1.bf16.msra.mxu0 0
    %406 = vmatprep.subr.bf16.mxu0 0
    %407 = vmatpush1.bf16.msra.mxu0 0
    %408 = vmatprep.subr.bf16.mxu0 0
    %409 = vmatpush1.bf16.msra.mxu0 0
    %410 = vmatprep.mubr.bf16.mxu0 0
    %411 = vmatmul.mubr.bf16.gmra.mrb[0].mxu0 %v372
    %v412 = vpop.f32.mrb[0].mxu0
    %v413 = vadd.f32 0.0, %v412
    %v414 = vpop.f32.mrb[0].mxu0
    %v415 = vpop.f32.mrb[0].mxu0
    %v416 = vpop.f32.mrb[0].mxu0
    %417 = vdwg.mxu0
    %v419 = vsel %vm254, %v370, 0
    %v422 = vsel %vm374, %v253, 0
    %424 = vmatprep.subr.bf16.mxu0 0
    %425 = vmatpush1.bf16.msra.mxu0 %v422
    %426 = vmatprep.subr.bf16.mxu0 0
    %427 = vmatpush1.bf16.msra.mxu0 0
    %428 = vmatprep.subr.bf16.mxu0 0
    %429 = vmatpush1.bf16.msra.mxu0 0
    %430 = vmatprep.subr.bf16.mxu0 0
    %431 = vmatpush1.bf16.msra.mxu0 0
    %432 = vmatprep.subr.bf16.mxu0 0
    %433 = vmatpush1.bf16.msra.mxu0 0
    %434 = vmatprep.subr.bf16.mxu0 0
    %435 = vmatpush1.bf16.msra.mxu0 0
    %436 = vmatprep.subr.bf16.mxu0 0
    %437 = vmatpush1.bf16.msra.mxu0 0
    %438 = vmatprep.subr.bf16.mxu0 0
    %439 = vmatpush1.bf16.msra.mxu0 0
    %440 = vmatprep.subr.bf16.mxu0 0
    %441 = vmatpush1.bf16.msra.mxu0 0
    %442 = vmatprep.subr.bf16.mxu0 0
    %443 = vmatpush1.bf16.msra.mxu0 0
    %444 = vmatprep.subr.bf16.mxu0 0
    %445 = vmatpush1.bf16.msra.mxu0 0
    %446 = vmatprep.subr.bf16.mxu0 0
    %447 = vmatpush1.bf16.msra.mxu0 0
    %448 = vmatprep.subr.bf16.mxu0 0
    %449 = vmatpush1.bf16.msra.mxu0 0
    %450 = vmatprep.subr.bf16.mxu0 0
    %451 = vmatpush1.bf16.msra.mxu0 0
    %452 = vmatprep.subr.bf16.mxu0 0
    %453 = vmatpush1.bf16.msra.mxu0 0
    %454 = vmatprep.subr.bf16.mxu0 0
    %455 = vmatpush1.bf16.msra.mxu0 0
    %456 = vmatprep.mubr.bf16.mxu0 0
    %457 = vmatmul.mubr.bf16.gmra.mrb[0].mxu0 %v419
    %v458 = vpop.f32.mrb[0].mxu0
    %v459 = vadd.f32 0.0, %v458
    %v460 = vpop.f32.mrb[0].mxu0
    %v461 = vpop.f32.mrb[0].mxu0
    %v462 = vpop.f32.mrb[0].mxu0
    %463 = vdwg.mxu0
    %v464 = vpack.c.bf16 %v459, %v413
    %v465 = vld [vmem:[%s3] sm:$0xf]
    %s466 = scalar_lea.vmem %s2, 16
    %v467 = vld [vmem:[%s466] sm:$0xf]
    %v468 = vld [vmem:[%s466 + $0x4] sm:$0xf]
    %v469 = vld [vmem:[%s466 + $0x8] sm:$0xf]
    %v470 = vld [vmem:[%s466 + $0xc] sm:$0xf]
    %s471 = scalar_lea.vmem %s2, 80
    %v472 = vld [vmem:[%s471] sm:$0xf]
    %v473 = vld [vmem:[%s471 + $0x4] sm:$0xf]
    %v474 = vld [vmem:[%s471 + $0x8] sm:$0xf]
    %v475 = vld [vmem:[%s471 + $0xc] sm:$0xf]
    %s476 = scalar_lea.vmem %s2, 144
    %v477 = vld [vmem:[%s476] sm:$0xf]
    %v478 = vld [vmem:[%s476 + $0x4] sm:$0xf]
    %v479 = vld [vmem:[%s476 + $0x8] sm:$0xf]
    %v480 = vld [vmem:[%s476 + $0xc] sm:$0xf]
    %v485 = vunpack.c.l.b16 %v467
    %v486 = vunpack.c.l.b16 %v468
    %v487 = vunpack.c.l.b16 %v469
    %v488 = vunpack.c.l.b16 %v470
    %v489 = vpack.c.b16 %v486, %v485
    %v490 = vpack.c.b16 %v488, %v487
    %494 = vrot.lane.b32.xlu0 %v74, 120
    %v495 = vpop.permute.xlu0 %494
    %497 = vmatprep.subr.bf16.mxu0 0
    %498 = vmatpush1.bf16.msra.mxu0 %v489
    %499 = vmatprep.subr.bf16.mxu0 0
    %500 = vmatpush1.bf16.msra.mxu0 %v490
    %501 = vmatprep.subr.bf16.mxu0 0
    %502 = vmatpush1.bf16.msra.mxu0 0
    %503 = vmatprep.subr.bf16.mxu0 0
    %504 = vmatpush1.bf16.msra.mxu0 0
    %505 = vmatprep.subr.bf16.mxu0 0
    %506 = vmatpush1.bf16.msra.mxu0 0
    %507 = vmatprep.subr.bf16.mxu0 0
    %508 = vmatpush1.bf16.msra.mxu0 0
    %509 = vmatprep.subr.bf16.mxu0 0
    %510 = vmatpush1.bf16.msra.mxu0 0
    %511 = vmatprep.subr.bf16.mxu0 0
    %512 = vmatpush1.bf16.msra.mxu0 0
    %513 = vmatprep.subr.bf16.mxu0 0
    %514 = vmatpush1.bf16.msra.mxu0 0
    %515 = vmatprep.subr.bf16.mxu0 0
    %516 = vmatpush1.bf16.msra.mxu0 0
    %517 = vmatprep.subr.bf16.mxu0 0
    %518 = vmatpush1.bf16.msra.mxu0 0
    %519 = vmatprep.subr.bf16.mxu0 0
    %520 = vmatpush1.bf16.msra.mxu0 0
    %521 = vmatprep.subr.bf16.mxu0 0
    %522 = vmatpush1.bf16.msra.mxu0 0
    %523 = vmatprep.subr.bf16.mxu0 0
    %524 = vmatpush1.bf16.msra.mxu0 0
    %525 = vmatprep.subr.bf16.mxu0 0
    %526 = vmatpush1.bf16.msra.mxu0 0
    %527 = vmatprep.subr.bf16.mxu0 0
    %528 = vmatpush1.bf16.msra.mxu0 0
    %529 = vmatprep.mubr.bf16.mxu0 0
    %530 = vmatmul.mubr.bf16.gmra.mrb[0].mxu0 %v89
    %v531 = vpop.f32.mrb[0].mxu0
    %v532 = vadd.f32 %v495, %v531
    %v533 = vpop.f32.mrb[0].mxu0
    %v534 = vpop.f32.mrb[0].mxu0
    %v535 = vadd.f32 %v495, %v534
    %v536 = vpop.f32.mrb[0].mxu0
    %537 = vdwg.mxu0
    %v542 = vunpack.c.l.b16 %v472
    %v543 = vunpack.c.l.b16 %v473
    %v544 = vunpack.c.l.b16 %v474
    %v545 = vunpack.c.l.b16 %v475
    %v546 = vpack.c.b16 %v543, %v542
    %v547 = vpack.c.b16 %v545, %v544
    %551 = vrot.lane.b32.xlu0 %v135, 120
    %v552 = vpop.permute.xlu0 %551
    %554 = vmatprep.subr.bf16.mxu0 0
    %555 = vmatpush1.bf16.msra.mxu0 %v546
    %556 = vmatprep.subr.bf16.mxu0 0
    %557 = vmatpush1.bf16.msra.mxu0 %v547
    %558 = vmatprep.subr.bf16.mxu0 0
    %559 = vmatpush1.bf16.msra.mxu0 0
    %560 = vmatprep.subr.bf16.mxu0 0
    %561 = vmatpush1.bf16.msra.mxu0 0
    %562 = vmatprep.subr.bf16.mxu0 0
    %563 = vmatpush1.bf16.msra.mxu0 0
    %564 = vmatprep.subr.bf16.mxu0 0
    %565 = vmatpush1.bf16.msra.mxu0 0
    %566 = vmatprep.subr.bf16.mxu0 0
    %567 = vmatpush1.bf16.msra.mxu0 0
    %568 = vmatprep.subr.bf16.mxu0 0
    %569 = vmatpush1.bf16.msra.mxu0 0
    %570 = vmatprep.subr.bf16.mxu0 0
    %571 = vmatpush1.bf16.msra.mxu0 0
    %572 = vmatprep.subr.bf16.mxu0 0
    %573 = vmatpush1.bf16.msra.mxu0 0
    %574 = vmatprep.subr.bf16.mxu0 0
    %575 = vmatpush1.bf16.msra.mxu0 0
    %576 = vmatprep.subr.bf16.mxu0 0
    %577 = vmatpush1.bf16.msra.mxu0 0
    %578 = vmatprep.subr.bf16.mxu0 0
    %579 = vmatpush1.bf16.msra.mxu0 0
    %580 = vmatprep.subr.bf16.mxu0 0
    %581 = vmatpush1.bf16.msra.mxu0 0
    %582 = vmatprep.subr.bf16.mxu0 0
    %583 = vmatpush1.bf16.msra.mxu0 0
    %584 = vmatprep.subr.bf16.mxu0 0
    %585 = vmatpush1.bf16.msra.mxu0 0
    %586 = vmatprep.mubr.bf16.mxu0 0
    %587 = vmatmul.mubr.bf16.gmra.mrb[0].mxu0 %v89
    %v588 = vpop.f32.mrb[0].mxu0
    %v589 = vadd.f32 %v552, %v588
    %v590 = vpop.f32.mrb[0].mxu0
    %v591 = vpop.f32.mrb[0].mxu0
    %v592 = vadd.f32 %v552, %v591
    %v593 = vpop.f32.mrb[0].mxu0
    %594 = vdwg.mxu0
    %v599 = vunpack.c.l.b16 %v477
    %v600 = vunpack.c.l.b16 %v478
    %v601 = vunpack.c.l.b16 %v479
    %v602 = vunpack.c.l.b16 %v480
    %v603 = vpack.c.b16 %v600, %v599
    %v604 = vpack.c.b16 %v602, %v601
    %608 = vrot.lane.b32.xlu0 %v192, 120
    %v609 = vpop.permute.xlu0 %608
    %611 = vmatprep.subr.bf16.mxu0 0
    %612 = vmatpush1.bf16.msra.mxu0 %v603
    %613 = vmatprep.subr.bf16.mxu0 0
    %614 = vmatpush1.bf16.msra.mxu0 %v604
    %615 = vmatprep.subr.bf16.mxu0 0
    %616 = vmatpush1.bf16.msra.mxu0 0
    %617 = vmatprep.subr.bf16.mxu0 0
    %618 = vmatpush1.bf16.msra.mxu0 0
    %619 = vmatprep.subr.bf16.mxu0 0
    %620 = vmatpush1.bf16.msra.mxu0 0
    %621 = vmatprep.subr.bf16.mxu0 0
    %622 = vmatpush1.bf16.msra.mxu0 0
    %623 = vmatprep.subr.bf16.mxu0 0
    %624 = vmatpush1.bf16.msra.mxu0 0
    %625 = vmatprep.subr.bf16.mxu0 0
    %626 = vmatpush1.bf16.msra.mxu0 0
    %627 = vmatprep.subr.bf16.mxu0 0
    %628 = vmatpush1.bf16.msra.mxu0 0
    %629 = vmatprep.subr.bf16.mxu0 0
    %630 = vmatpush1.bf16.msra.mxu0 0
    %631 = vmatprep.subr.bf16.mxu0 0
    %632 = vmatpush1.bf16.msra.mxu0 0
    %633 = vmatprep.subr.bf16.mxu0 0
    %634 = vmatpush1.bf16.msra.mxu0 0
    %635 = vmatprep.subr.bf16.mxu0 0
    %636 = vmatpush1.bf16.msra.mxu0 0
    %637 = vmatprep.subr.bf16.mxu0 0
    %638 = vmatpush1.bf16.msra.mxu0 0
    %639 = vmatprep.subr.bf16.mxu0 0
    %640 = vmatpush1.bf16.msra.mxu0 0
    %641 = vmatprep.subr.bf16.mxu0 0
    %642 = vmatpush1.bf16.msra.mxu0 0
    %643 = vmatprep.mubr.bf16.mxu0 0
    %644 = vmatmul.mubr.bf16.gmra.mrb[0].mxu0 %v89
    %v645 = vpop.f32.mrb[0].mxu0
    %v646 = vadd.f32 %v609, %v645
    %v647 = vpop.f32.mrb[0].mxu0
    %v648 = vpop.f32.mrb[0].mxu0
    %v649 = vadd.f32 %v609, %v648
    %v650 = vpop.f32.mrb[0].mxu0
    %651 = vdwg.mxu0
    %v652 = vmul.f32 %v532, 0.35355338
    %v653 = vmul.f32 %v535, 0.35355338
    %v654 = vpack.c.bf16 %v652, %v652
    %v655 = vpack.c.bf16 %v653, %v653
    %v656 = vpack.c.bf16 %v589, %v589
    %v657 = vpack.c.bf16 %v592, %v592
    %v658 = vpack.c.bf16 %v646, %v646
    %v659 = vpack.c.bf16 %v649, %v649
    %v661 = vsel %vm254, %v654, 0
    %v664 = vsel %vm254, %v656, 0
    %666 = vmatprep.subr.bf16.mxu0 0
    %667 = vmatpush1.bf16.xpose.msra.mxu0 %v664
    %668 = vmatprep.subr.bf16.mxu0 0
    %669 = vmatpush1.bf16.xpose.msra.mxu0 0
    %670 = vmatprep.subr.bf16.mxu0 0
    %671 = vmatpush1.bf16.xpose.msra.mxu0 0
    %672 = vmatprep.subr.bf16.mxu0 0
    %673 = vmatpush1.bf16.xpose.msra.mxu0 0
    %674 = vmatprep.subr.bf16.mxu0 0
    %675 = vmatpush1.bf16.xpose.msra.mxu0 0
    %676 = vmatprep.subr.bf16.mxu0 0
    %677 = vmatpush1.bf16.xpose.msra.mxu0 0
    %678 = vmatprep.subr.bf16.mxu0 0
    %679 = vmatpush1.bf16.xpose.msra.mxu0 0
    %680 = vmatprep.subr.bf16.mxu0 0
    %681 = vmatpush1.bf16.xpose.msra.mxu0 0
    %682 = vmatprep.subr.bf16.mxu0 0
    %683 = vmatpush1.bf16.xpose.msra.mxu0 0
    %684 = vmatprep.subr.bf16.mxu0 0
    %685 = vmatpush1.bf16.xpose.msra.mxu0 0
    %686 = vmatprep.subr.bf16.mxu0 0
    %687 = vmatpush1.bf16.xpose.msra.mxu0 0
    %688 = vmatprep.subr.bf16.mxu0 0
    %689 = vmatpush1.bf16.xpose.msra.mxu0 0
    %690 = vmatprep.subr.bf16.mxu0 0
    %691 = vmatpush1.bf16.xpose.msra.mxu0 0
    %692 = vmatprep.subr.bf16.mxu0 0
    %693 = vmatpush1.bf16.xpose.msra.mxu0 0
    %694 = vmatprep.subr.bf16.mxu0 0
    %695 = vmatpush1.bf16.xpose.msra.mxu0 0
    %696 = vmatprep.subr.bf16.mxu0 0
    %697 = vmatpush1.bf16.xpose.msra.mxu0 0
    %698 = vmatprep.mubr.bf16.mxu0 0
    %699 = vmatmul.mubr.bf16.gmra.mrb[0].mxu0 %v661
    %v700 = vpop.f32.mrb[0].mxu0
    %v701 = vadd.f32 %v50, %v700
    %v702 = vpop.f32.mrb[0].mxu0
    %v703 = vpop.f32.mrb[0].mxu0
    %v704 = vpop.f32.mrb[0].mxu0
    %705 = vdwg.mxu0
    %v707 = vsel %vm254, %v655, 0
    %v710 = vsel %vm254, %v657, 0
    %712 = vmatprep.subr.bf16.mxu0 0
    %713 = vmatpush1.bf16.xpose.msra.mxu0 %v710
    %714 = vmatprep.subr.bf16.mxu0 0
    %715 = vmatpush1.bf16.xpose.msra.mxu0 0
    %716 = vmatprep.subr.bf16.mxu0 0
    %717 = vmatpush1.bf16.xpose.msra.mxu0 0
    %718 = vmatprep.subr.bf16.mxu0 0
    %719 = vmatpush1.bf16.xpose.msra.mxu0 0
    %720 = vmatprep.subr.bf16.mxu0 0
    %721 = vmatpush1.bf16.xpose.msra.mxu0 0
    %722 = vmatprep.subr.bf16.mxu0 0
    %723 = vmatpush1.bf16.xpose.msra.mxu0 0
    %724 = vmatprep.subr.bf16.mxu0 0
    %725 = vmatpush1.bf16.xpose.msra.mxu0 0
    %726 = vmatprep.subr.bf16.mxu0 0
    %727 = vmatpush1.bf16.xpose.msra.mxu0 0
    %728 = vmatprep.subr.bf16.mxu0 0
    %729 = vmatpush1.bf16.xpose.msra.mxu0 0
    %730 = vmatprep.subr.bf16.mxu0 0
    %731 = vmatpush1.bf16.xpose.msra.mxu0 0
    %732 = vmatprep.subr.bf16.mxu0 0
    %733 = vmatpush1.bf16.xpose.msra.mxu0 0
    %734 = vmatprep.subr.bf16.mxu0 0
    %735 = vmatpush1.bf16.xpose.msra.mxu0 0
    %736 = vmatprep.subr.bf16.mxu0 0
    %737 = vmatpush1.bf16.xpose.msra.mxu0 0
    %738 = vmatprep.subr.bf16.mxu0 0
    %739 = vmatpush1.bf16.xpose.msra.mxu0 0
    %740 = vmatprep.subr.bf16.mxu0 0
    %741 = vmatpush1.bf16.xpose.msra.mxu0 0
    %742 = vmatprep.subr.bf16.mxu0 0
    %743 = vmatpush1.bf16.xpose.msra.mxu0 0
    %744 = vmatprep.mubr.bf16.mxu0 0
    %745 = vmatmul.mubr.bf16.gmra.mrb[0].mxu0 %v707
    %v746 = vpop.f32.mrb[0].mxu0
    %v747 = vadd.f32 %v54, %v746
    %v748 = vpop.f32.mrb[0].mxu0
    %v749 = vpop.f32.mrb[0].mxu0
    %v750 = vpop.f32.mrb[0].mxu0
    %751 = vdwg.mxu0
    %v752 = vsel %vm254, %v701, -inf
    %753 = vmax.xlane.f32.xlu0 %v752
    %v754 = vpop.xlane.xlu0 %753
    %v755 = vsel %vm254, %v747, -inf
    %756 = vmax.xlane.f32.xlu0 %v755
    %v757 = vpop.xlane.xlu0 %756
    %v758 = vsub.f32 %v701, %v754
    %v759 = vsub.f32 %v747, %v757
    %v760 = vmul.f32 %v758, 1.442695
    %v761 = vpow.pop %v760
    %v762 = vmul.f32 %v759, 1.442695
    %v763 = vpow.pop %v762
    %v764 = vsel %vm254, %v761, 0.0
    %765 = vadd.xlane.f32.xlu0 %v764
    %v766 = vpop.xlane.xlu0 %765
    %v767 = vsel %vm254, %v763, 0.0
    %768 = vadd.xlane.f32.xlu0 %v767
    %v769 = vpop.xlane.xlu0 %768
    %v770 = vrcp.pop %v766
    %v771 = vrcp.pop %v769
    %v772 = vmul.f32 %v761, %v770
    %v773 = vmul.f32 %v763, %v771
    %v774 = vpack.c.bf16 %v772, %v772
    %v775 = vpack.c.bf16 %v773, %v773
    %v777 = vsel %vm254, %v774, 0
    %v780 = vsel %vm374, %v658, 0
    %782 = vmatprep.subr.bf16.mxu0 0
    %783 = vmatpush1.bf16.msra.mxu0 %v780
    %784 = vmatprep.subr.bf16.mxu0 0
    %785 = vmatpush1.bf16.msra.mxu0 0
    %786 = vmatprep.subr.bf16.mxu0 0
    %787 = vmatpush1.bf16.msra.mxu0 0
    %788 = vmatprep.subr.bf16.mxu0 0
    %789 = vmatpush1.bf16.msra.mxu0 0
    %790 = vmatprep.subr.bf16.mxu0 0
    %791 = vmatpush1.bf16.msra.mxu0 0
    %792 = vmatprep.subr.bf16.mxu0 0
    %793 = vmatpush1.bf16.msra.mxu0 0
    %794 = vmatprep.subr.bf16.mxu0 0
    %795 = vmatpush1.bf16.msra.mxu0 0
    %796 = vmatprep.subr.bf16.mxu0 0
    %797 = vmatpush1.bf16.msra.mxu0 0
    %798 = vmatprep.subr.bf16.mxu0 0
    %799 = vmatpush1.bf16.msra.mxu0 0
    %800 = vmatprep.subr.bf16.mxu0 0
    %801 = vmatpush1.bf16.msra.mxu0 0
    %802 = vmatprep.subr.bf16.mxu0 0
    %803 = vmatpush1.bf16.msra.mxu0 0
    %804 = vmatprep.subr.bf16.mxu0 0
    %805 = vmatpush1.bf16.msra.mxu0 0
    %806 = vmatprep.subr.bf16.mxu0 0
    %807 = vmatpush1.bf16.msra.mxu0 0
    %808 = vmatprep.subr.bf16.mxu0 0
    %809 = vmatpush1.bf16.msra.mxu0 0
    %810 = vmatprep.subr.bf16.mxu0 0
    %811 = vmatpush1.bf16.msra.mxu0 0
    %812 = vmatprep.subr.bf16.mxu0 0
    %813 = vmatpush1.bf16.msra.mxu0 0
    %814 = vmatprep.mubr.bf16.mxu0 0
    %815 = vmatmul.mubr.bf16.gmra.mrb[0].mxu0 %v777
    %v816 = vpop.f32.mrb[0].mxu0
    %v817 = vadd.f32 0.0, %v816
    %v818 = vpop.f32.mrb[0].mxu0
    %v819 = vpop.f32.mrb[0].mxu0
    %v820 = vpop.f32.mrb[0].mxu0
    %821 = vdwg.mxu0
    %v823 = vsel %vm254, %v775, 0
    %v826 = vsel %vm374, %v659, 0
    %828 = vmatprep.subr.bf16.mxu0 0
    %829 = vmatpush1.bf16.msra.mxu0 %v826
    %830 = vmatprep.subr.bf16.mxu0 0
    %831 = vmatpush1.bf16.msra.mxu0 0
    %832 = vmatprep.subr.bf16.mxu0 0
    %833 = vmatpush1.bf16.msra.mxu0 0
    %834 = vmatprep.subr.bf16.mxu0 0
    %835 = vmatpush1.bf16.msra.mxu0 0
    %836 = vmatprep.subr.bf16.mxu0 0
    %837 = vmatpush1.bf16.msra.mxu0 0
    %838 = vmatprep.subr.bf16.mxu0 0
    %839 = vmatpush1.bf16.msra.mxu0 0
    %840 = vmatprep.subr.bf16.mxu0 0
    %841 = vmatpush1.bf16.msra.mxu0 0
    %842 = vmatprep.subr.bf16.mxu0 0
    %843 = vmatpush1.bf16.msra.mxu0 0
    %844 = vmatprep.subr.bf16.mxu0 0
    %845 = vmatpush1.bf16.msra.mxu0 0
    %846 = vmatprep.subr.bf16.mxu0 0
    %847 = vmatpush1.bf16.msra.mxu0 0
    %848 = vmatprep.subr.bf16.mxu0 0
    %849 = vmatpush1.bf16.msra.mxu0 0
    %850 = vmatprep.subr.bf16.mxu0 0
    %851 = vmatpush1.bf16.msra.mxu0 0
    %852 = vmatprep.subr.bf16.mxu0 0
    %853 = vmatpush1.bf16.msra.mxu0 0
    %854 = vmatprep.subr.bf16.mxu0 0
    %855 = vmatpush1.bf16.msra.mxu0 0
    %856 = vmatprep.subr.bf16.mxu0 0
    %857 = vmatpush1.bf16.msra.mxu0 0
    %858 = vmatprep.subr.bf16.mxu0 0
    %859 = vmatpush1.bf16.msra.mxu0 0
    %860 = vmatprep.mubr.bf16.mxu0 0
    %861 = vmatmul.mubr.bf16.gmra.mrb[0].mxu0 %v823
    %v862 = vpop.f32.mrb[0].mxu0
    %v863 = vadd.f32 0.0, %v862
    %v864 = vpop.f32.mrb[0].mxu0
    %v865 = vpop.f32.mrb[0].mxu0
    %v866 = vpop.f32.mrb[0].mxu0
    %867 = vdwg.mxu0
    %v868 = vpack.c.bf16 %v863, %v817
    %s869 = scalar_lea.vmem %s3, 4
    %v870 = vld [vmem:[%s869] sm:$0xf]
    %v872 = vsel %vm254, %v868, 0
    %v875 = vsel %vm374, %v870, 0
    %877 = vmatprep.subr.bf16.mxu0 0
    %878 = vmatpush1.bf16.msra.mxu0 %v875
    %879 = vmatprep.subr.bf16.mxu0 0
    %880 = vmatpush1.bf16.msra.mxu0 0
    %881 = vmatprep.subr.bf16.mxu0 0
    %882 = vmatpush1.bf16.msra.mxu0 0
    %883 = vmatprep.subr.bf16.mxu0 0
    %884 = vmatpush1.bf16.msra.mxu0 0
    %885 = vmatprep.subr.bf16.mxu0 0
    %886 = vmatpush1.bf16.msra.mxu0 0
    %887 = vmatprep.subr.bf16.mxu0 0
    %888 = vmatpush1.bf16.msra.mxu0 0
    %889 = vmatprep.subr.bf16.mxu0 0
    %890 = vmatpush1.bf16.msra.mxu0 0
    %891 = vmatprep.subr.bf16.mxu0 0
    %892 = vmatpush1.bf16.msra.mxu0 0
    %893 = vmatprep.subr.bf16.mxu0 0
    %894 = vmatpush1.bf16.msra.mxu0 0
    %895 = vmatprep.subr.bf16.mxu0 0
    %896 = vmatpush1.bf16.msra.mxu0 0
    %897 = vmatprep.subr.bf16.mxu0 0
    %898 = vmatpush1.bf16.msra.mxu0 0
    %899 = vmatprep.subr.bf16.mxu0 0
    %900 = vmatpush1.bf16.msra.mxu0 0
    %901 = vmatprep.subr.bf16.mxu0 0
    %902 = vmatpush1.bf16.msra.mxu0 0
    %903 = vmatprep.subr.bf16.mxu0 0
    %904 = vmatpush1.bf16.msra.mxu0 0
    %905 = vmatprep.subr.bf16.mxu0 0
    %906 = vmatpush1.bf16.msra.mxu0 0
    %907 = vmatprep.subr.bf16.mxu0 0
    %908 = vmatpush1.bf16.msra.mxu0 0
    %909 = vmatprep.mubr.bf16.mxu0 0
    %910 = vmatmul.mubr.bf16.gmra.mrb[0].mxu0 %v872
    %v911 = vpop.f32.mrb[0].mxu0
    %v912 = vadd.f32 0.0, %v911
    %v913 = vpop.f32.mrb[0].mxu0
    %v914 = vpop.f32.mrb[0].mxu0
    %v915 = vadd.f32 0.0, %v914
    %v916 = vpop.f32.mrb[0].mxu0
    %917 = vdwg.mxu0
    %v919 = vsel %vm254, %v464, 0
    %v922 = vsel %vm374, %v465, 0
    %924 = vmatprep.subr.bf16.mxu0 0
    %925 = vmatpush1.bf16.msra.mxu0 %v922
    %926 = vmatprep.subr.bf16.mxu0 0
    %927 = vmatpush1.bf16.msra.mxu0 0
    %928 = vmatprep.subr.bf16.mxu0 0
    %929 = vmatpush1.bf16.msra.mxu0 0
    %930 = vmatprep.subr.bf16.mxu0 0
    %931 = vmatpush1.bf16.msra.mxu0 0
    %932 = vmatprep.subr.bf16.mxu0 0
    %933 = vmatpush1.bf16.msra.mxu0 0
    %934 = vmatprep.subr.bf16.mxu0 0
    %935 = vmatpush1.bf16.msra.mxu0 0
    %936 = vmatprep.subr.bf16.mxu0 0
    %937 = vmatpush1.bf16.msra.mxu0 0
    %938 = vmatprep.subr.bf16.mxu0 0
    %939 = vmatpush1.bf16.msra.mxu0 0
    %940 = vmatprep.subr.bf16.mxu0 0
    %941 = vmatpush1.bf16.msra.mxu0 0
    %942 = vmatprep.subr.bf16.mxu0 0
    %943 = vmatpush1.bf16.msra.mxu0 0
    %944 = vmatprep.subr.bf16.mxu0 0
    %945 = vmatpush1.bf16.msra.mxu0 0
    %946 = vmatprep.subr.bf16.mxu0 0
    %947 = vmatpush1.bf16.msra.mxu0 0
    %948 = vmatprep.subr.bf16.mxu0 0
    %949 = vmatpush1.bf16.msra.mxu0 0
    %950 = vmatprep.subr.bf16.mxu0 0
    %951 = vmatpush1.bf16.msra.mxu0 0
    %952 = vmatprep.subr.bf16.mxu0 0
    %953 = vmatpush1.bf16.msra.mxu0 0
    %954 = vmatprep.subr.bf16.mxu0 0
    %955 = vmatpush1.bf16.msra.mxu0 0
    %956 = vmatprep.mubr.bf16.mxu0 0
    %957 = vmatmul.mubr.bf16.gmra.mrb[0].mxu0 %v919
    %v958 = vpop.f32.mrb[0].mxu0
    %v959 = vadd.f32 %v912, %v958
    %v960 = vpop.f32.mrb[0].mxu0
    %v961 = vpop.f32.mrb[0].mxu0
    %v962 = vadd.f32 %v915, %v961
    %v963 = vpop.f32.mrb[0].mxu0
    %964 = vdwg.mxu0
    %s965 = scalar_lea.vmem %s2, 32
    %v966 = vld [vmem:[%s965] sm:$0xf]
    %v967 = vld [vmem:[%s965 + $0x4] sm:$0xf]
    %v968 = vld [vmem:[%s965 + $0x8] sm:$0xf]
    %v969 = vld [vmem:[%s965 + $0xc] sm:$0xf]
    %s970 = scalar_lea.vmem %s2, 96
    %v971 = vld [vmem:[%s970] sm:$0xf]
    %v972 = vld [vmem:[%s970 + $0x4] sm:$0xf]
    %v973 = vld [vmem:[%s970 + $0x8] sm:$0xf]
    %v974 = vld [vmem:[%s970 + $0xc] sm:$0xf]
    %s975 = scalar_lea.vmem %s2, 160
    %v976 = vld [vmem:[%s975] sm:$0xf]
    %v977 = vld [vmem:[%s975 + $0x4] sm:$0xf]
    %v978 = vld [vmem:[%s975 + $0x8] sm:$0xf]
    %v979 = vld [vmem:[%s975 + $0xc] sm:$0xf]
    %v984 = vunpack.c.l.b16 %v966
    %v985 = vunpack.c.l.b16 %v967
    %v986 = vunpack.c.l.b16 %v968
    %v987 = vunpack.c.l.b16 %v969
    %v988 = vpack.c.b16 %v985, %v984
    %v989 = vpack.c.b16 %v987, %v986
    %992 = vrot.lane.b32.xlu0 %v74, 112
    %v993 = vpop.permute.xlu0 %992
    %995 = vmatprep.subr.bf16.mxu0 0
    %996 = vmatpush1.bf16.msra.mxu0 %v988
    %997 = vmatprep.subr.bf16.mxu0 0
    %998 = vmatpush1.bf16.msra.mxu0 %v989
    %999 = vmatprep.subr.bf16.mxu0 0
    %1000 = vmatpush1.bf16.msra.mxu0 0
    %1001 = vmatprep.subr.bf16.mxu0 0
    %1002 = vmatpush1.bf16.msra.mxu0 0
    %1003 = vmatprep.subr.bf16.mxu0 0
    %1004 = vmatpush1.bf16.msra.mxu0 0
    %1005 = vmatprep.subr.bf16.mxu0 0
    %1006 = vmatpush1.bf16.msra.mxu0 0
    %1007 = vmatprep.subr.bf16.mxu0 0
    %1008 = vmatpush1.bf16.msra.mxu0 0
    %1009 = vmatprep.subr.bf16.mxu0 0
    %1010 = vmatpush1.bf16.msra.mxu0 0
    %1011 = vmatprep.subr.bf16.mxu0 0
    %1012 = vmatpush1.bf16.msra.mxu0 0
    %1013 = vmatprep.subr.bf16.mxu0 0
    %1014 = vmatpush1.bf16.msra.mxu0 0
    %1015 = vmatprep.subr.bf16.mxu0 0
    %1016 = vmatpush1.bf16.msra.mxu0 0
    %1017 = vmatprep.subr.bf16.mxu0 0
    %1018 = vmatpush1.bf16.msra.mxu0 0
    %1019 = vmatprep.subr.bf16.mxu0 0
    %1020 = vmatpush1.bf16.msra.mxu0 0
    %1021 = vmatprep.subr.bf16.mxu0 0
    %1022 = vmatpush1.bf16.msra.mxu0 0
    %1023 = vmatprep.subr.bf16.mxu0 0
    %1024 = vmatpush1.bf16.msra.mxu0 0
    %1025 = vmatprep.subr.bf16.mxu0 0
    %1026 = vmatpush1.bf16.msra.mxu0 0
    %1027 = vmatprep.mubr.bf16.mxu0 0
    %1028 = vmatmul.mubr.bf16.gmra.mrb[0].mxu0 %v89
    %v1029 = vpop.f32.mrb[0].mxu0
    %v1030 = vadd.f32 %v993, %v1029
    %v1031 = vpop.f32.mrb[0].mxu0
    %v1032 = vpop.f32.mrb[0].mxu0
    %v1033 = vadd.f32 %v993, %v1032
    %v1034 = vpop.f32.mrb[0].mxu0
    %1035 = vdwg.mxu0
    %v1040 = vunpack.c.l.b16 %v971
    %v1041 = vunpack.c.l.b16 %v972
    %v1042 = vunpack.c.l.b16 %v973
    %v1043 = vunpack.c.l.b16 %v974
    %v1044 = vpack.c.b16 %v1041, %v1040
    %v1045 = vpack.c.b16 %v1043, %v1042
    %1048 = vrot.lane.b32.xlu0 %v135, 112
    %v1049 = vpop.permute.xlu0 %1048
    %1051 = vmatprep.subr.bf16.mxu0 0
    %1052 = vmatpush1.bf16.msra.mxu0 %v1044
    %1053 = vmatprep.subr.bf16.mxu0 0
    %1054 = vmatpush1.bf16.msra.mxu0 %v1045
    %1055 = vmatprep.subr.bf16.mxu0 0
    %1056 = vmatpush1.bf16.msra.mxu0 0
    %1057 = vmatprep.subr.bf16.mxu0 0
    %1058 = vmatpush1.bf16.msra.mxu0 0
    %1059 = vmatprep.subr.bf16.mxu0 0
    %1060 = vmatpush1.bf16.msra.mxu0 0
    %1061 = vmatprep.subr.bf16.mxu0 0
    %1062 = vmatpush1.bf16.msra.mxu0 0
    %1063 = vmatprep.subr.bf16.mxu0 0
    %1064 = vmatpush1.bf16.msra.mxu0 0
    %1065 = vmatprep.subr.bf16.mxu0 0
    %1066 = vmatpush1.bf16.msra.mxu0 0
    %1067 = vmatprep.subr.bf16.mxu0 0
    %1068 = vmatpush1.bf16.msra.mxu0 0
    %1069 = vmatprep.subr.bf16.mxu0 0
    %1070 = vmatpush1.bf16.msra.mxu0 0
    %1071 = vmatprep.subr.bf16.mxu0 0
    %1072 = vmatpush1.bf16.msra.mxu0 0
    %1073 = vmatprep.subr.bf16.mxu0 0
    %1074 = vmatpush1.bf16.msra.mxu0 0
    %1075 = vmatprep.subr.bf16.mxu0 0
    %1076 = vmatpush1.bf16.msra.mxu0 0
    %1077 = vmatprep.subr.bf16.mxu0 0
    %1078 = vmatpush1.bf16.msra.mxu0 0
    %1079 = vmatprep.subr.bf16.mxu0 0
    %1080 = vmatpush1.bf16.msra.mxu0 0
    %1081 = vmatprep.subr.bf16.mxu0 0
    %1082 = vmatpush1.bf16.msra.mxu0 0
    %1083 = vmatprep.mubr.bf16.mxu0 0
    %1084 = vmatmul.mubr.bf16.gmra.mrb[0].mxu0 %v89
    %v1085 = vpop.f32.mrb[0].mxu0
    %v1086 = vadd.f32 %v1049, %v1085
    %v1087 = vpop.f32.mrb[0].mxu0
    %v1088 = vpop.f32.mrb[0].mxu0
    %v1089 = vadd.f32 %v1049, %v1088
    %v1090 = vpop.f32.mrb[0].mxu0
    %1091 = vdwg.mxu0
    %v1096 = vunpack.c.l.b16 %v976
    %v1097 = vunpack.c.l.b16 %v977
    %v1098 = vunpack.c.l.b16 %v978
    %v1099 = vunpack.c.l.b16 %v979
    %v1100 = vpack.c.b16 %v1097, %v1096
    %v1101 = vpack.c.b16 %v1099, %v1098
    %1104 = vrot.lane.b32.xlu0 %v192, 112
    %v1105 = vpop.permute.xlu0 %1104
    %1107 = vmatprep.subr.bf16.mxu0 0
    %1108 = vmatpush1.bf16.msra.mxu0 %v1100
    %1109 = vmatprep.subr.bf16.mxu0 0
    %1110 = vmatpush1.bf16.msra.mxu0 %v1101
    %1111 = vmatprep.subr.bf16.mxu0 0
    %1112 = vmatpush1.bf16.msra.mxu0 0
    %1113 = vmatprep.subr.bf16.mxu0 0
    %1114 = vmatpush1.bf16.msra.mxu0 0
    %1115 = vmatprep.subr.bf16.mxu0 0
    %1116 = vmatpush1.bf16.msra.mxu0 0
    %1117 = vmatprep.subr.bf16.mxu0 0
    %1118 = vmatpush1.bf16.msra.mxu0 0
    %1119 = vmatprep.subr.bf16.mxu0 0
    %1120 = vmatpush1.bf16.msra.mxu0 0
    %1121 = vmatprep.subr.bf16.mxu0 0
    %1122 = vmatpush1.bf16.msra.mxu0 0
    %1123 = vmatprep.subr.bf16.mxu0 0
    %1124 = vmatpush1.bf16.msra.mxu0 0
    %1125 = vmatprep.subr.bf16.mxu0 0
    %1126 = vmatpush1.bf16.msra.mxu0 0
    %1127 = vmatprep.subr.bf16.mxu0 0
    %1128 = vmatpush1.bf16.msra.mxu0 0
    %1129 = vmatprep.subr.bf16.mxu0 0
    %1130 = vmatpush1.bf16.msra.mxu0 0
    %1131 = vmatprep.subr.bf16.mxu0 0
    %1132 = vmatpush1.bf16.msra.mxu0 0
    %1133 = vmatprep.subr.bf16.mxu0 0
    %1134 = vmatpush1.bf16.msra.mxu0 0
    %1135 = vmatprep.subr.bf16.mxu0 0
    %1136 = vmatpush1.bf16.msra.mxu0 0
    %1137 = vmatprep.subr.bf16.mxu0 0
    %1138 = vmatpush1.bf16.msra.mxu0 0
    %1139 = vmatprep.mubr.bf16.mxu0 0
    %1140 = vmatmul.mubr.bf16.gmra.mrb[0].mxu0 %v89
    %v1141 = vpop.f32.mrb[0].mxu0
    %v1142 = vadd.f32 %v1105, %v1141
    %v1143 = vpop.f32.mrb[0].mxu0
    %v1144 = vpop.f32.mrb[0].mxu0
    %v1145 = vadd.f32 %v1105, %v1144
    %v1146 = vpop.f32.mrb[0].mxu0
    %1147 = vdwg.mxu0
    %v1148 = vmul.f32 %v1030, 0.35355338
    %v1149 = vmul.f32 %v1033, 0.35355338
    %v1150 = vpack.c.bf16 %v1148, %v1148
    %v1151 = vpack.c.bf16 %v1149, %v1149
    %v1152 = vpack.c.bf16 %v1086, %v1086
    %v1153 = vpack.c.bf16 %v1089, %v1089
    %v1154 = vpack.c.bf16 %v1142, %v1142
    %v1155 = vpack.c.bf16 %v1145, %v1145
    %v1157 = vsel %vm254, %v1150, 0
    %v1160 = vsel %vm254, %v1152, 0
    %1162 = vmatprep.subr.bf16.mxu0 0
    %1163 = vmatpush1.bf16.xpose.msra.mxu0 %v1160
    %1164 = vmatprep.subr.bf16.mxu0 0
    %1165 = vmatpush1.bf16.xpose.msra.mxu0 0
    %1166 = vmatprep.subr.bf16.mxu0 0
    %1167 = vmatpush1.bf16.xpose.msra.mxu0 0
    %1168 = vmatprep.subr.bf16.mxu0 0
    %1169 = vmatpush1.bf16.xpose.msra.mxu0 0
    %1170 = vmatprep.subr.bf16.mxu0 0
    %1171 = vmatpush1.bf16.xpose.msra.mxu0 0
    %1172 = vmatprep.subr.bf16.mxu0 0
    %1173 = vmatpush1.bf16.xpose.msra.mxu0 0
    %1174 = vmatprep.subr.bf16.mxu0 0
    %1175 = vmatpush1.bf16.xpose.msra.mxu0 0
    %1176 = vmatprep.subr.bf16.mxu0 0
    %1177 = vmatpush1.bf16.xpose.msra.mxu0 0
    %1178 = vmatprep.subr.bf16.mxu0 0
    %1179 = vmatpush1.bf16.xpose.msra.mxu0 0
    %1180 = vmatprep.subr.bf16.mxu0 0
    %1181 = vmatpush1.bf16.xpose.msra.mxu0 0
    %1182 = vmatprep.subr.bf16.mxu0 0
    %1183 = vmatpush1.bf16.xpose.msra.mxu0 0
    %1184 = vmatprep.subr.bf16.mxu0 0
    %1185 = vmatpush1.bf16.xpose.msra.mxu0 0
    %1186 = vmatprep.subr.bf16.mxu0 0
    %1187 = vmatpush1.bf16.xpose.msra.mxu0 0
    %1188 = vmatprep.subr.bf16.mxu0 0
    %1189 = vmatpush1.bf16.xpose.msra.mxu0 0
    %1190 = vmatprep.subr.bf16.mxu0 0
    %1191 = vmatpush1.bf16.xpose.msra.mxu0 0
    %1192 = vmatprep.subr.bf16.mxu0 0
    %1193 = vmatpush1.bf16.xpose.msra.mxu0 0
    %1194 = vmatprep.mubr.bf16.mxu0 0
    %1195 = vmatmul.mubr.bf16.gmra.mrb[0].mxu0 %v1157
    %v1196 = vpop.f32.mrb[0].mxu0
    %v1197 = vadd.f32 %v50, %v1196
    %v1198 = vpop.f32.mrb[0].mxu0
    %v1199 = vpop.f32.mrb[0].mxu0
    %v1200 = vpop.f32.mrb[0].mxu0
    %1201 = vdwg.mxu0
    %v1203 = vsel %vm254, %v1151, 0
    %v1206 = vsel %vm254, %v1153, 0
    %1208 = vmatprep.subr.bf16.mxu0 0
    %1209 = vmatpush1.bf16.xpose.msra.mxu0 %v1206
    %1210 = vmatprep.subr.bf16.mxu0 0
    %1211 = vmatpush1.bf16.xpose.msra.mxu0 0
    %1212 = vmatprep.subr.bf16.mxu0 0
    %1213 = vmatpush1.bf16.xpose.msra.mxu0 0
    %1214 = vmatprep.subr.bf16.mxu0 0
    %1215 = vmatpush1.bf16.xpose.msra.mxu0 0
    %1216 = vmatprep.subr.bf16.mxu0 0
    %1217 = vmatpush1.bf16.xpose.msra.mxu0 0
    %1218 = vmatprep.subr.bf16.mxu0 0
    %1219 = vmatpush1.bf16.xpose.msra.mxu0 0
    %1220 = vmatprep.subr.bf16.mxu0 0
    %1221 = vmatpush1.bf16.xpose.msra.mxu0 0
    %1222 = vmatprep.subr.bf16.mxu0 0
    %1223 = vmatpush1.bf16.xpose.msra.mxu0 0
    %1224 = vmatprep.subr.bf16.mxu0 0
    %1225 = vmatpush1.bf16.xpose.msra.mxu0 0
    %1226 = vmatprep.subr.bf16.mxu0 0
    %1227 = vmatpush1.bf16.xpose.msra.mxu0 0
    %1228 = vmatprep.subr.bf16.mxu0 0
    %1229 = vmatpush1.bf16.xpose.msra.mxu0 0
    %1230 = vmatprep.subr.bf16.mxu0 0
    %1231 = vmatpush1.bf16.xpose.msra.mxu0 0
    %1232 = vmatprep.subr.bf16.mxu0 0
    %1233 = vmatpush1.bf16.xpose.msra.mxu0 0
    %1234 = vmatprep.subr.bf16.mxu0 0
    %1235 = vmatpush1.bf16.xpose.msra.mxu0 0
    %1236 = vmatprep.subr.bf16.mxu0 0
    %1237 = vmatpush1.bf16.xpose.msra.mxu0 0
    %1238 = vmatprep.subr.bf16.mxu0 0
    %1239 = vmatpush1.bf16.xpose.msra.mxu0 0
    %1240 = vmatprep.mubr.bf16.mxu0 0
    %1241 = vmatmul.mubr.bf16.gmra.mrb[0].mxu0 %v1203
    %v1242 = vpop.f32.mrb[0].mxu0
    %v1243 = vadd.f32 %v54, %v1242
    %v1244 = vpop.f32.mrb[0].mxu0
    %v1245 = vpop.f32.mrb[0].mxu0
    %v1246 = vpop.f32.mrb[0].mxu0
    %1247 = vdwg.mxu0
    %v1248 = vsel %vm254, %v1197, -inf
    %1249 = vmax.xlane.f32.xlu0 %v1248
    %v1250 = vpop.xlane.xlu0 %1249
    %v1251 = vsel %vm254, %v1243, -inf
    %1252 = vmax.xlane.f32.xlu0 %v1251
    %v1253 = vpop.xlane.xlu0 %1252
    %v1254 = vsub.f32 %v1197, %v1250
    %v1255 = vsub.f32 %v1243, %v1253
    %v1256 = vmul.f32 %v1254, 1.442695
    %v1257 = vpow.pop %v1256
    %v1258 = vmul.f32 %v1255, 1.442695
    %v1259 = vpow.pop %v1258
    %v1260 = vsel %vm254, %v1257, 0.0
    %1261 = vadd.xlane.f32.xlu0 %v1260
    %v1262 = vpop.xlane.xlu0 %1261
    %v1263 = vsel %vm254, %v1259, 0.0
    %1264 = vadd.xlane.f32.xlu0 %v1263
    %v1265 = vpop.xlane.xlu0 %1264
    %v1266 = vrcp.pop %v1262
    %v1267 = vrcp.pop %v1265
    %v1268 = vmul.f32 %v1257, %v1266
    %v1269 = vmul.f32 %v1259, %v1267
    %v1270 = vpack.c.bf16 %v1268, %v1268
    %v1271 = vpack.c.bf16 %v1269, %v1269
    %v1273 = vsel %vm254, %v1270, 0
    %v1276 = vsel %vm374, %v1154, 0
    %1278 = vmatprep.subr.bf16.mxu0 0
    %1279 = vmatpush1.bf16.msra.mxu0 %v1276
    %1280 = vmatprep.subr.bf16.mxu0 0
    %1281 = vmatpush1.bf16.msra.mxu0 0
    %1282 = vmatprep.subr.bf16.mxu0 0
    %1283 = vmatpush1.bf16.msra.mxu0 0
    %1284 = vmatprep.subr.bf16.mxu0 0
    %1285 = vmatpush1.bf16.msra.mxu0 0
    %1286 = vmatprep.subr.bf16.mxu0 0
    %1287 = vmatpush1.bf16.msra.mxu0 0
    %1288 = vmatprep.subr.bf16.mxu0 0
    %1289 = vmatpush1.bf16.msra.mxu0 0
    %1290 = vmatprep.subr.bf16.mxu0 0
    %1291 = vmatpush1.bf16.msra.mxu0 0
    %1292 = vmatprep.subr.bf16.mxu0 0
    %1293 = vmatpush1.bf16.msra.mxu0 0
    %1294 = vmatprep.subr.bf16.mxu0 0
    %1295 = vmatpush1.bf16.msra.mxu0 0
    %1296 = vmatprep.subr.bf16.mxu0 0
    %1297 = vmatpush1.bf16.msra.mxu0 0
    %1298 = vmatprep.subr.bf16.mxu0 0
    %1299 = vmatpush1.bf16.msra.mxu0 0
    %1300 = vmatprep.subr.bf16.mxu0 0
    %1301 = vmatpush1.bf16.msra.mxu0 0
    %1302 = vmatprep.subr.bf16.mxu0 0
    %1303 = vmatpush1.bf16.msra.mxu0 0
    %1304 = vmatprep.subr.bf16.mxu0 0
    %1305 = vmatpush1.bf16.msra.mxu0 0
    %1306 = vmatprep.subr.bf16.mxu0 0
    %1307 = vmatpush1.bf16.msra.mxu0 0
    %1308 = vmatprep.subr.bf16.mxu0 0
    %1309 = vmatpush1.bf16.msra.mxu0 0
    %1310 = vmatprep.mubr.bf16.mxu0 0
    %1311 = vmatmul.mubr.bf16.gmra.mrb[0].mxu0 %v1273
    %v1312 = vpop.f32.mrb[0].mxu0
    %v1313 = vadd.f32 0.0, %v1312
    %v1314 = vpop.f32.mrb[0].mxu0
    %v1315 = vpop.f32.mrb[0].mxu0
    %v1316 = vpop.f32.mrb[0].mxu0
    %1317 = vdwg.mxu0
    %v1319 = vsel %vm254, %v1271, 0
    %v1322 = vsel %vm374, %v1155, 0
    %1324 = vmatprep.subr.bf16.mxu0 0
    %1325 = vmatpush1.bf16.msra.mxu0 %v1322
    %1326 = vmatprep.subr.bf16.mxu0 0
    %1327 = vmatpush1.bf16.msra.mxu0 0
    %1328 = vmatprep.subr.bf16.mxu0 0
    %1329 = vmatpush1.bf16.msra.mxu0 0
    %1330 = vmatprep.subr.bf16.mxu0 0
    %1331 = vmatpush1.bf16.msra.mxu0 0
    %1332 = vmatprep.subr.bf16.mxu0 0
    %1333 = vmatpush1.bf16.msra.mxu0 0
    %1334 = vmatprep.subr.bf16.mxu0 0
    %1335 = vmatpush1.bf16.msra.mxu0 0
    %1336 = vmatprep.subr.bf16.mxu0 0
    %1337 = vmatpush1.bf16.msra.mxu0 0
    %1338 = vmatprep.subr.bf16.mxu0 0
    %1339 = vmatpush1.bf16.msra.mxu0 0
    %1340 = vmatprep.subr.bf16.mxu0 0
    %1341 = vmatpush1.bf16.msra.mxu0 0
    %1342 = vmatprep.subr.bf16.mxu0 0
    %1343 = vmatpush1.bf16.msra.mxu0 0
    %1344 = vmatprep.subr.bf16.mxu0 0
    %1345 = vmatpush1.bf16.msra.mxu0 0
    %1346 = vmatprep.subr.bf16.mxu0 0
    %1347 = vmatpush1.bf16.msra.mxu0 0
    %1348 = vmatprep.subr.bf16.mxu0 0
    %1349 = vmatpush1.bf16.msra.mxu0 0
    %1350 = vmatprep.subr.bf16.mxu0 0
    %1351 = vmatpush1.bf16.msra.mxu0 0
    %1352 = vmatprep.subr.bf16.mxu0 0
    %1353 = vmatpush1.bf16.msra.mxu0 0
    %1354 = vmatprep.subr.bf16.mxu0 0
    %1355 = vmatpush1.bf16.msra.mxu0 0
    %1356 = vmatprep.mubr.bf16.mxu0 0
    %1357 = vmatmul.mubr.bf16.gmra.mrb[0].mxu0 %v1319
    %v1358 = vpop.f32.mrb[0].mxu0
    %v1359 = vadd.f32 0.0, %v1358
    %v1360 = vpop.f32.mrb[0].mxu0
    %v1361 = vpop.f32.mrb[0].mxu0
    %v1362 = vpop.f32.mrb[0].mxu0
    %1363 = vdwg.mxu0
    %v1364 = vpack.c.bf16 %v1359, %v1313
    %s1365 = scalar_lea.vmem %s3, 8
    %v1366 = vld [vmem:[%s1365] sm:$0xf]
    %v1368 = vsel %vm254, %v1364, 0
    %v1371 = vsel %vm374, %v1366, 0
    %1373 = vmatprep.subr.bf16.mxu0 0
    %1374 = vmatpush1.bf16.msra.mxu0 %v1371
    %1375 = vmatprep.subr.bf16.mxu0 0
    %1376 = vmatpush1.bf16.msra.mxu0 0
    %1377 = vmatprep.subr.bf16.mxu0 0
    %1378 = vmatpush1.bf16.msra.mxu0 0
    %1379 = vmatprep.subr.bf16.mxu0 0
    %1380 = vmatpush1.bf16.msra.mxu0 0
    %1381 = vmatprep.subr.bf16.mxu0 0
    %1382 = vmatpush1.bf16.msra.mxu0 0
    %1383 = vmatprep.subr.bf16.mxu0 0
    %1384 = vmatpush1.bf16.msra.mxu0 0
    %1385 = vmatprep.subr.bf16.mxu0 0
    %1386 = vmatpush1.bf16.msra.mxu0 0
    %1387 = vmatprep.subr.bf16.mxu0 0
    %1388 = vmatpush1.bf16.msra.mxu0 0
    %1389 = vmatprep.subr.bf16.mxu0 0
    %1390 = vmatpush1.bf16.msra.mxu0 0
    %1391 = vmatprep.subr.bf16.mxu0 0
    %1392 = vmatpush1.bf16.msra.mxu0 0
    %1393 = vmatprep.subr.bf16.mxu0 0
    %1394 = vmatpush1.bf16.msra.mxu0 0
    %1395 = vmatprep.subr.bf16.mxu0 0
    %1396 = vmatpush1.bf16.msra.mxu0 0
    %1397 = vmatprep.subr.bf16.mxu0 0
    %1398 = vmatpush1.bf16.msra.mxu0 0
    %1399 = vmatprep.subr.bf16.mxu0 0
    %1400 = vmatpush1.bf16.msra.mxu0 0
    %1401 = vmatprep.subr.bf16.mxu0 0
    %1402 = vmatpush1.bf16.msra.mxu0 0
    %1403 = vmatprep.subr.bf16.mxu0 0
    %1404 = vmatpush1.bf16.msra.mxu0 0
    %1405 = vmatprep.mubr.bf16.mxu0 0
    %1406 = vmatmul.mubr.bf16.gmra.mrb[0].mxu0 %v1368
    %v1407 = vpop.f32.mrb[0].mxu0
    %v1408 = vadd.f32 0.0, %v1407
    %v1409 = vpop.f32.mrb[0].mxu0
    %v1410 = vpop.f32.mrb[0].mxu0
    %v1411 = vadd.f32 0.0, %v1410
    %v1412 = vpop.f32.mrb[0].mxu0
    %1413 = vdwg.mxu0
    %v1414 = vadd.f32 %v959, %v1408
    %v1415 = vadd.f32 %v962, %v1411
    %s1416 = scalar_lea.vmem %s2, 48
    %v1417 = vld [vmem:[%s1416] sm:$0xf]
    %v1418 = vld [vmem:[%s1416 + $0x4] sm:$0xf]
    %v1419 = vld [vmem:[%s1416 + $0x8] sm:$0xf]
    %v1420 = vld [vmem:[%s1416 + $0xc] sm:$0xf]
    %s1421 = scalar_lea.vmem %s2, 112
    %v1422 = vld [vmem:[%s1421] sm:$0xf]
    %v1423 = vld [vmem:[%s1421 + $0x4] sm:$0xf]
    %v1424 = vld [vmem:[%s1421 + $0x8] sm:$0xf]
    %v1425 = vld [vmem:[%s1421 + $0xc] sm:$0xf]
    %s1426 = scalar_lea.vmem %s2, 176
    %v1427 = vld [vmem:[%s1426] sm:$0xf]
    %v1428 = vld [vmem:[%s1426 + $0x4] sm:$0xf]
    %v1429 = vld [vmem:[%s1426 + $0x8] sm:$0xf]
    %v1430 = vld [vmem:[%s1426 + $0xc] sm:$0xf]
    %v1435 = vunpack.c.l.b16 %v1417
    %v1436 = vunpack.c.l.b16 %v1418
    %v1437 = vunpack.c.l.b16 %v1419
    %v1438 = vunpack.c.l.b16 %v1420
    %v1439 = vpack.c.b16 %v1436, %v1435
    %v1440 = vpack.c.b16 %v1438, %v1437
    %1443 = vrot.lane.b32.xlu0 %v74, 104
    %v1444 = vpop.permute.xlu0 %1443
    %1446 = vmatprep.subr.bf16.mxu0 0
    %1447 = vmatpush1.bf16.msra.mxu0 %v1439
    %1448 = vmatprep.subr.bf16.mxu0 0
    %1449 = vmatpush1.bf16.msra.mxu0 %v1440
    %1450 = vmatprep.subr.bf16.mxu0 0
    %1451 = vmatpush1.bf16.msra.mxu0 0
    %1452 = vmatprep.subr.bf16.mxu0 0
    %1453 = vmatpush1.bf16.msra.mxu0 0
    %1454 = vmatprep.subr.bf16.mxu0 0
    %1455 = vmatpush1.bf16.msra.mxu0 0
    %1456 = vmatprep.subr.bf16.mxu0 0
    %1457 = vmatpush1.bf16.msra.mxu0 0
    %1458 = vmatprep.subr.bf16.mxu0 0
    %1459 = vmatpush1.bf16.msra.mxu0 0
    %1460 = vmatprep.subr.bf16.mxu0 0
    %1461 = vmatpush1.bf16.msra.mxu0 0
    %1462 = vmatprep.subr.bf16.mxu0 0
    %1463 = vmatpush1.bf16.msra.mxu0 0
    %1464 = vmatprep.subr.bf16.mxu0 0
    %1465 = vmatpush1.bf16.msra.mxu0 0
    %1466 = vmatprep.subr.bf16.mxu0 0
    %1467 = vmatpush1.bf16.msra.mxu0 0
    %1468 = vmatprep.subr.bf16.mxu0 0
    %1469 = vmatpush1.bf16.msra.mxu0 0
    %1470 = vmatprep.subr.bf16.mxu0 0
    %1471 = vmatpush1.bf16.msra.mxu0 0
    %1472 = vmatprep.subr.bf16.mxu0 0
    %1473 = vmatpush1.bf16.msra.mxu0 0
    %1474 = vmatprep.subr.bf16.mxu0 0
    %1475 = vmatpush1.bf16.msra.mxu0 0
    %1476 = vmatprep.subr.bf16.mxu0 0
    %1477 = vmatpush1.bf16.msra.mxu0 0
    %1478 = vmatprep.mubr.bf16.mxu0 0
    %1479 = vmatmul.mubr.bf16.gmra.mrb[0].mxu0 %v89
    %v1480 = vpop.f32.mrb[0].mxu0
    %v1481 = vadd.f32 %v1444, %v1480
    %v1482 = vpop.f32.mrb[0].mxu0
    %v1483 = vpop.f32.mrb[0].mxu0
    %v1484 = vadd.f32 %v1444, %v1483
    %v1485 = vpop.f32.mrb[0].mxu0
    %1486 = vdwg.mxu0
    %v1491 = vunpack.c.l.b16 %v1422
    %v1492 = vunpack.c.l.b16 %v1423
    %v1493 = vunpack.c.l.b16 %v1424
    %v1494 = vunpack.c.l.b16 %v1425
    %v1495 = vpack.c.b16 %v1492, %v1491
    %v1496 = vpack.c.b16 %v1494, %v1493
    %1499 = vrot.lane.b32.xlu0 %v135, 104
    %v1500 = vpop.permute.xlu0 %1499
    %1502 = vmatprep.subr.bf16.mxu0 0
    %1503 = vmatpush1.bf16.msra.mxu0 %v1495
    %1504 = vmatprep.subr.bf16.mxu0 0
    %1505 = vmatpush1.bf16.msra.mxu0 %v1496
    %1506 = vmatprep.subr.bf16.mxu0 0
    %1507 = vmatpush1.bf16.msra.mxu0 0
    %1508 = vmatprep.subr.bf16.mxu0 0
    %1509 = vmatpush1.bf16.msra.mxu0 0
    %1510 = vmatprep.subr.bf16.mxu0 0
    %1511 = vmatpush1.bf16.msra.mxu0 0
    %1512 = vmatprep.subr.bf16.mxu0 0
    %1513 = vmatpush1.bf16.msra.mxu0 0
    %1514 = vmatprep.subr.bf16.mxu0 0
    %1515 = vmatpush1.bf16.msra.mxu0 0
    %1516 = vmatprep.subr.bf16.mxu0 0
    %1517 = vmatpush1.bf16.msra.mxu0 0
    %1518 = vmatprep.subr.bf16.mxu0 0
    %1519 = vmatpush1.bf16.msra.mxu0 0
    %1520 = vmatprep.subr.bf16.mxu0 0
    %1521 = vmatpush1.bf16.msra.mxu0 0
    %1522 = vmatprep.subr.bf16.mxu0 0
    %1523 = vmatpush1.bf16.msra.mxu0 0
    %1524 = vmatprep.subr.bf16.mxu0 0
    %1525 = vmatpush1.bf16.msra.mxu0 0
    %1526 = vmatprep.subr.bf16.mxu0 0
    %1527 = vmatpush1.bf16.msra.mxu0 0
    %1528 = vmatprep.subr.bf16.mxu0 0
    %1529 = vmatpush1.bf16.msra.mxu0 0
    %1530 = vmatprep.subr.bf16.mxu0 0
    %1531 = vmatpush1.bf16.msra.mxu0 0
    %1532 = vmatprep.subr.bf16.mxu0 0
    %1533 = vmatpush1.bf16.msra.mxu0 0
    %1534 = vmatprep.mubr.bf16.mxu0 0
    %1535 = vmatmul.mubr.bf16.gmra.mrb[0].mxu0 %v89
    %v1536 = vpop.f32.mrb[0].mxu0
    %v1537 = vadd.f32 %v1500, %v1536
    %v1538 = vpop.f32.mrb[0].mxu0
    %v1539 = vpop.f32.mrb[0].mxu0
    %v1540 = vadd.f32 %v1500, %v1539
    %v1541 = vpop.f32.mrb[0].mxu0
    %1542 = vdwg.mxu0
    %v1547 = vunpack.c.l.b16 %v1427
    %v1548 = vunpack.c.l.b16 %v1428
    %v1549 = vunpack.c.l.b16 %v1429
    %v1550 = vunpack.c.l.b16 %v1430
    %v1551 = vpack.c.b16 %v1548, %v1547
    %v1552 = vpack.c.b16 %v1550, %v1549
    %1555 = vrot.lane.b32.xlu0 %v192, 104
    %v1556 = vpop.permute.xlu0 %1555
    %1558 = vmatprep.subr.bf16.mxu0 0
    %1559 = vmatpush1.bf16.msra.mxu0 %v1551
    %1560 = vmatprep.subr.bf16.mxu0 0
    %1561 = vmatpush1.bf16.msra.mxu0 %v1552
    %1562 = vmatprep.subr.bf16.mxu0 0
    %1563 = vmatpush1.bf16.msra.mxu0 0
    %1564 = vmatprep.subr.bf16.mxu0 0
    %1565 = vmatpush1.bf16.msra.mxu0 0
    %1566 = vmatprep.subr.bf16.mxu0 0
    %1567 = vmatpush1.bf16.msra.mxu0 0
    %1568 = vmatprep.subr.bf16.mxu0 0
    %1569 = vmatpush1.bf16.msra.mxu0 0
    %1570 = vmatprep.subr.bf16.mxu0 0
    %1571 = vmatpush1.bf16.msra.mxu0 0
    %1572 = vmatprep.subr.bf16.mxu0 0
    %1573 = vmatpush1.bf16.msra.mxu0 0
    %1574 = vmatprep.subr.bf16.mxu0 0
    %1575 = vmatpush1.bf16.msra.mxu0 0
    %1576 = vmatprep.subr.bf16.mxu0 0
    %1577 = vmatpush1.bf16.msra.mxu0 0
    %1578 = vmatprep.subr.bf16.mxu0 0
    %1579 = vmatpush1.bf16.msra.mxu0 0
    %1580 = vmatprep.subr.bf16.mxu0 0
    %1581 = vmatpush1.bf16.msra.mxu0 0
    %1582 = vmatprep.subr.bf16.mxu0 0
    %1583 = vmatpush1.bf16.msra.mxu0 0
    %1584 = vmatprep.subr.bf16.mxu0 0
    %1585 = vmatpush1.bf16.msra.mxu0 0
    %1586 = vmatprep.subr.bf16.mxu0 0
    %1587 = vmatpush1.bf16.msra.mxu0 0
    %1588 = vmatprep.subr.bf16.mxu0 0
    %1589 = vmatpush1.bf16.msra.mxu0 0
    %1590 = vmatprep.mubr.bf16.mxu0 0
    %1591 = vmatmul.mubr.bf16.gmra.mrb[0].mxu0 %v89
    %v1592 = vpop.f32.mrb[0].mxu0
    %v1593 = vadd.f32 %v1556, %v1592
    %v1594 = vpop.f32.mrb[0].mxu0
    %v1595 = vpop.f32.mrb[0].mxu0
    %v1596 = vadd.f32 %v1556, %v1595
    %v1597 = vpop.f32.mrb[0].mxu0
    %1598 = vdwg.mxu0
    %v1599 = vmul.f32 %v1481, 0.35355338
    %v1600 = vmul.f32 %v1484, 0.35355338
    %v1601 = vpack.c.bf16 %v1599, %v1599
    %v1602 = vpack.c.bf16 %v1600, %v1600
    %v1603 = vpack.c.bf16 %v1537, %v1537
    %v1604 = vpack.c.bf16 %v1540, %v1540
    %v1605 = vpack.c.bf16 %v1593, %v1593
    %v1606 = vpack.c.bf16 %v1596, %v1596
    %v1608 = vsel %vm254, %v1601, 0
    %v1611 = vsel %vm254, %v1603, 0
    %1613 = vmatprep.subr.bf16.mxu0 0
    %1614 = vmatpush1.bf16.xpose.msra.mxu0 %v1611
    %1615 = vmatprep.subr.bf16.mxu0 0
    %1616 = vmatpush1.bf16.xpose.msra.mxu0 0
    %1617 = vmatprep.subr.bf16.mxu0 0
    %1618 = vmatpush1.bf16.xpose.msra.mxu0 0
    %1619 = vmatprep.subr.bf16.mxu0 0
    %1620 = vmatpush1.bf16.xpose.msra.mxu0 0
    %1621 = vmatprep.subr.bf16.mxu0 0
    %1622 = vmatpush1.bf16.xpose.msra.mxu0 0
    %1623 = vmatprep.subr.bf16.mxu0 0
    %1624 = vmatpush1.bf16.xpose.msra.mxu0 0
    %1625 = vmatprep.subr.bf16.mxu0 0
    %1626 = vmatpush1.bf16.xpose.msra.mxu0 0
    %1627 = vmatprep.subr.bf16.mxu0 0
    %1628 = vmatpush1.bf16.xpose.msra.mxu0 0
    %1629 = vmatprep.subr.bf16.mxu0 0
    %1630 = vmatpush1.bf16.xpose.msra.mxu0 0
    %1631 = vmatprep.subr.bf16.mxu0 0
    %1632 = vmatpush1.bf16.xpose.msra.mxu0 0
    %1633 = vmatprep.subr.bf16.mxu0 0
    %1634 = vmatpush1.bf16.xpose.msra.mxu0 0
    %1635 = vmatprep.subr.bf16.mxu0 0
    %1636 = vmatpush1.bf16.xpose.msra.mxu0 0
    %1637 = vmatprep.subr.bf16.mxu0 0
    %1638 = vmatpush1.bf16.xpose.msra.mxu0 0
    %1639 = vmatprep.subr.bf16.mxu0 0
    %1640 = vmatpush1.bf16.xpose.msra.mxu0 0
    %1641 = vmatprep.subr.bf16.mxu0 0
    %1642 = vmatpush1.bf16.xpose.msra.mxu0 0
    %1643 = vmatprep.subr.bf16.mxu0 0
    %1644 = vmatpush1.bf16.xpose.msra.mxu0 0
    %1645 = vmatprep.mubr.bf16.mxu0 0
    %1646 = vmatmul.mubr.bf16.gmra.mrb[0].mxu0 %v1608
    %v1647 = vpop.f32.mrb[0].mxu0
    %v1648 = vadd.f32 %v50, %v1647
    %v1649 = vpop.f32.mrb[0].mxu0
    %v1650 = vpop.f32.mrb[0].mxu0
    %v1651 = vpop.f32.mrb[0].mxu0
    %1652 = vdwg.mxu0
    %v1654 = vsel %vm254, %v1602, 0
    %v1657 = vsel %vm254, %v1604, 0
    %1659 = vmatprep.subr.bf16.mxu0 0
    %1660 = vmatpush1.bf16.xpose.msra.mxu0 %v1657
    %1661 = vmatprep.subr.bf16.mxu0 0
    %1662 = vmatpush1.bf16.xpose.msra.mxu0 0
    %1663 = vmatprep.subr.bf16.mxu0 0
    %1664 = vmatpush1.bf16.xpose.msra.mxu0 0
    %1665 = vmatprep.subr.bf16.mxu0 0
    %1666 = vmatpush1.bf16.xpose.msra.mxu0 0
    %1667 = vmatprep.subr.bf16.mxu0 0
    %1668 = vmatpush1.bf16.xpose.msra.mxu0 0
    %1669 = vmatprep.subr.bf16.mxu0 0
    %1670 = vmatpush1.bf16.xpose.msra.mxu0 0
    %1671 = vmatprep.subr.bf16.mxu0 0
    %1672 = vmatpush1.bf16.xpose.msra.mxu0 0
    %1673 = vmatprep.subr.bf16.mxu0 0
    %1674 = vmatpush1.bf16.xpose.msra.mxu0 0
    %1675 = vmatprep.subr.bf16.mxu0 0
    %1676 = vmatpush1.bf16.xpose.msra.mxu0 0
    %1677 = vmatprep.subr.bf16.mxu0 0
    %1678 = vmatpush1.bf16.xpose.msra.mxu0 0
    %1679 = vmatprep.subr.bf16.mxu0 0
    %1680 = vmatpush1.bf16.xpose.msra.mxu0 0
    %1681 = vmatprep.subr.bf16.mxu0 0
    %1682 = vmatpush1.bf16.xpose.msra.mxu0 0
    %1683 = vmatprep.subr.bf16.mxu0 0
    %1684 = vmatpush1.bf16.xpose.msra.mxu0 0
    %1685 = vmatprep.subr.bf16.mxu0 0
    %1686 = vmatpush1.bf16.xpose.msra.mxu0 0
    %1687 = vmatprep.subr.bf16.mxu0 0
    %1688 = vmatpush1.bf16.xpose.msra.mxu0 0
    %1689 = vmatprep.subr.bf16.mxu0 0
    %1690 = vmatpush1.bf16.xpose.msra.mxu0 0
    %1691 = vmatprep.mubr.bf16.mxu0 0
    %1692 = vmatmul.mubr.bf16.gmra.mrb[0].mxu0 %v1654
    %v1693 = vpop.f32.mrb[0].mxu0
    %v1694 = vadd.f32 %v54, %v1693
    %v1695 = vpop.f32.mrb[0].mxu0
    %v1696 = vpop.f32.mrb[0].mxu0
    %v1697 = vpop.f32.mrb[0].mxu0
    %1698 = vdwg.mxu0
    %v1699 = vsel %vm254, %v1648, -inf
    %1700 = vmax.xlane.f32.xlu0 %v1699
    %v1701 = vpop.xlane.xlu0 %1700
    %v1702 = vsel %vm254, %v1694, -inf
    %1703 = vmax.xlane.f32.xlu0 %v1702
    %v1704 = vpop.xlane.xlu0 %1703
    %v1705 = vsub.f32 %v1648, %v1701
    %v1706 = vsub.f32 %v1694, %v1704
    %v1707 = vmul.f32 %v1705, 1.442695
    %v1708 = vpow.pop %v1707
    %v1709 = vmul.f32 %v1706, 1.442695
    %v1710 = vpow.pop %v1709
    %v1711 = vsel %vm254, %v1708, 0.0
    %1712 = vadd.xlane.f32.xlu0 %v1711
    %v1713 = vpop.xlane.xlu0 %1712
    %v1714 = vsel %vm254, %v1710, 0.0
    %1715 = vadd.xlane.f32.xlu0 %v1714
    %v1716 = vpop.xlane.xlu0 %1715
    %v1717 = vrcp.pop %v1713
    %v1718 = vrcp.pop %v1716
    %v1719 = vmul.f32 %v1708, %v1717
    %v1720 = vmul.f32 %v1710, %v1718
    %v1721 = vpack.c.bf16 %v1719, %v1719
    %v1722 = vpack.c.bf16 %v1720, %v1720
    %v1724 = vsel %vm254, %v1721, 0
    %v1727 = vsel %vm374, %v1605, 0
    %1729 = vmatprep.subr.bf16.mxu0 0
    %1730 = vmatpush1.bf16.msra.mxu0 %v1727
    %1731 = vmatprep.subr.bf16.mxu0 0
    %1732 = vmatpush1.bf16.msra.mxu0 0
    %1733 = vmatprep.subr.bf16.mxu0 0
    %1734 = vmatpush1.bf16.msra.mxu0 0
    %1735 = vmatprep.subr.bf16.mxu0 0
    %1736 = vmatpush1.bf16.msra.mxu0 0
    %1737 = vmatprep.subr.bf16.mxu0 0
    %1738 = vmatpush1.bf16.msra.mxu0 0
    %1739 = vmatprep.subr.bf16.mxu0 0
    %1740 = vmatpush1.bf16.msra.mxu0 0
    %1741 = vmatprep.subr.bf16.mxu0 0
    %1742 = vmatpush1.bf16.msra.mxu0 0
    %1743 = vmatprep.subr.bf16.mxu0 0
    %1744 = vmatpush1.bf16.msra.mxu0 0
    %1745 = vmatprep.subr.bf16.mxu0 0
    %1746 = vmatpush1.bf16.msra.mxu0 0
    %1747 = vmatprep.subr.bf16.mxu0 0
    %1748 = vmatpush1.bf16.msra.mxu0 0
    %1749 = vmatprep.subr.bf16.mxu0 0
    %1750 = vmatpush1.bf16.msra.mxu0 0
    %1751 = vmatprep.subr.bf16.mxu0 0
    %1752 = vmatpush1.bf16.msra.mxu0 0
    %1753 = vmatprep.subr.bf16.mxu0 0
    %1754 = vmatpush1.bf16.msra.mxu0 0
    %1755 = vmatprep.subr.bf16.mxu0 0
    %1756 = vmatpush1.bf16.msra.mxu0 0
    %1757 = vmatprep.subr.bf16.mxu0 0
    %1758 = vmatpush1.bf16.msra.mxu0 0
    %1759 = vmatprep.subr.bf16.mxu0 0
    %1760 = vmatpush1.bf16.msra.mxu0 0
    %1761 = vmatprep.mubr.bf16.mxu0 0
    %1762 = vmatmul.mubr.bf16.gmra.mrb[0].mxu0 %v1724
    %v1763 = vpop.f32.mrb[0].mxu0
    %v1764 = vadd.f32 0.0, %v1763
    %v1765 = vpop.f32.mrb[0].mxu0
    %v1766 = vpop.f32.mrb[0].mxu0
    %v1767 = vpop.f32.mrb[0].mxu0
    %1768 = vdwg.mxu0
    %v1770 = vsel %vm254, %v1722, 0
    %v1773 = vsel %vm374, %v1606, 0
    %1775 = vmatprep.subr.bf16.mxu0 0
    %1776 = vmatpush1.bf16.msra.mxu0 %v1773
    %1777 = vmatprep.subr.bf16.mxu0 0
    %1778 = vmatpush1.bf16.msra.mxu0 0
    %1779 = vmatprep.subr.bf16.mxu0 0
    %1780 = vmatpush1.bf16.msra.mxu0 0
    %1781 = vmatprep.subr.bf16.mxu0 0
    %1782 = vmatpush1.bf16.msra.mxu0 0
    %1783 = vmatprep.subr.bf16.mxu0 0
    %1784 = vmatpush1.bf16.msra.mxu0 0
    %1785 = vmatprep.subr.bf16.mxu0 0
    %1786 = vmatpush1.bf16.msra.mxu0 0
    %1787 = vmatprep.subr.bf16.mxu0 0
    %1788 = vmatpush1.bf16.msra.mxu0 0
    %1789 = vmatprep.subr.bf16.mxu0 0
    %1790 = vmatpush1.bf16.msra.mxu0 0
    %1791 = vmatprep.subr.bf16.mxu0 0
    %1792 = vmatpush1.bf16.msra.mxu0 0
    %1793 = vmatprep.subr.bf16.mxu0 0
    %1794 = vmatpush1.bf16.msra.mxu0 0
    %1795 = vmatprep.subr.bf16.mxu0 0
    %1796 = vmatpush1.bf16.msra.mxu0 0
    %1797 = vmatprep.subr.bf16.mxu0 0
    %1798 = vmatpush1.bf16.msra.mxu0 0
    %1799 = vmatprep.subr.bf16.mxu0 0
    %1800 = vmatpush1.bf16.msra.mxu0 0
    %1801 = vmatprep.subr.bf16.mxu0 0
    %1802 = vmatpush1.bf16.msra.mxu0 0
    %1803 = vmatprep.subr.bf16.mxu0 0
    %1804 = vmatpush1.bf16.msra.mxu0 0
    %1805 = vmatprep.subr.bf16.mxu0 0
    %1806 = vmatpush1.bf16.msra.mxu0 0
    %1807 = vmatprep.mubr.bf16.mxu0 0
    %1808 = vmatmul.mubr.bf16.gmra.mrb[0].mxu0 %v1770
    %v1809 = vpop.f32.mrb[0].mxu0
    %v1810 = vadd.f32 0.0, %v1809
    %v1811 = vpop.f32.mrb[0].mxu0
    %v1812 = vpop.f32.mrb[0].mxu0
    %v1813 = vpop.f32.mrb[0].mxu0
    %1814 = vdwg.mxu0
    %v1815 = vpack.c.bf16 %v1810, %v1764
    %s1816 = scalar_lea.vmem %s3, 12
    %v1817 = vld [vmem:[%s1816] sm:$0xf]
    %v1819 = vsel %vm254, %v1815, 0
    %v1822 = vsel %vm374, %v1817, 0
    %1824 = vmatprep.subr.bf16.mxu0 0
    %1825 = vmatpush1.bf16.msra.mxu0 %v1822
    %1826 = vmatprep.subr.bf16.mxu0 0
    %1827 = vmatpush1.bf16.msra.mxu0 0
    %1828 = vmatprep.subr.bf16.mxu0 0
    %1829 = vmatpush1.bf16.msra.mxu0 0
    %1830 = vmatprep.subr.bf16.mxu0 0
    %1831 = vmatpush1.bf16.msra.mxu0 0
    %1832 = vmatprep.subr.bf16.mxu0 0
    %1833 = vmatpush1.bf16.msra.mxu0 0
    %1834 = vmatprep.subr.bf16.mxu0 0
    %1835 = vmatpush1.bf16.msra.mxu0 0
    %1836 = vmatprep.subr.bf16.mxu0 0
    %1837 = vmatpush1.bf16.msra.mxu0 0
    %1838 = vmatprep.subr.bf16.mxu0 0
    %1839 = vmatpush1.bf16.msra.mxu0 0
    %1840 = vmatprep.subr.bf16.mxu0 0
    %1841 = vmatpush1.bf16.msra.mxu0 0
    %1842 = vmatprep.subr.bf16.mxu0 0
    %1843 = vmatpush1.bf16.msra.mxu0 0
    %1844 = vmatprep.subr.bf16.mxu0 0
    %1845 = vmatpush1.bf16.msra.mxu0 0
    %1846 = vmatprep.subr.bf16.mxu0 0
    %1847 = vmatpush1.bf16.msra.mxu0 0
    %1848 = vmatprep.subr.bf16.mxu0 0
    %1849 = vmatpush1.bf16.msra.mxu0 0
    %1850 = vmatprep.subr.bf16.mxu0 0
    %1851 = vmatpush1.bf16.msra.mxu0 0
    %1852 = vmatprep.subr.bf16.mxu0 0
    %1853 = vmatpush1.bf16.msra.mxu0 0
    %1854 = vmatprep.subr.bf16.mxu0 0
    %1855 = vmatpush1.bf16.msra.mxu0 0
    %1856 = vmatprep.mubr.bf16.mxu0 0
    %1857 = vmatmul.mubr.bf16.gmra.mrb[0].mxu0 %v1819
    %v1858 = vpop.f32.mrb[0].mxu0
    %v1859 = vadd.f32 0.0, %v1858
    %v1860 = vpop.f32.mrb[0].mxu0
    %v1861 = vpop.f32.mrb[0].mxu0
    %v1862 = vadd.f32 0.0, %v1861
    %v1863 = vpop.f32.mrb[0].mxu0
    %1864 = vdwg.mxu0
    %v1865 = vadd.f32 %v1414, %v1859
    %v1866 = vadd.f32 %v1415, %v1862
    %v1867 = vlaneseq
    %v1868 = vshrl.u32 %v1867, 7
    %v1869 = vsub.s32 0, %v1868
    %v1870 = vrot.slane %v37, %v1869
    %v1871 = vadd.f32 %v1865, %v1870
    %v1872 = vadd.f32 %v1866, %v1870
    %v1873 = vadd.f32 %v31, %v1871
    %v1874 = vadd.f32 %v32, %v1872
    %v1875 = vsel %vm87, %v1873, 0.0
    %1876 = vadd.xlane.f32.xlu0 %v1875
    %v1877 = vpop.xlane.xlu0 %1876
    %v1878 = vsel %vm87, %v1874, 0.0
    %1879 = vadd.xlane.f32.xlu0 %v1878
    %v1880 = vpop.xlane.xlu0 %1879
    %v1881 = vrcp.pop 32.0
    %v1882 = vmul.f32 %v1877, %v1881
    %v1883 = vmul.f32 %v1880, %v1881
    %v1884 = vsub.f32 %v1873, %v1882
    %v1885 = vsub.f32 %v1874, %v1883
    %v1886 = vmul.f32 %v1884, %v1884
    %v1887 = vmul.f32 %v1885, %v1885
    %v1888 = vsel %vm87, %v1886, 0.0
    %1889 = vadd.xlane.f32.xlu0 %v1888
    %v1890 = vpop.xlane.xlu0 %1889
    %v1891 = vsel %vm87, %v1887, 0.0
    %1892 = vadd.xlane.f32.xlu0 %v1891
    %v1893 = vpop.xlane.xlu0 %1892
    %v1894 = vmul.f32 %v1890, %v1881
    %v1895 = vmul.f32 %v1893, %v1881
    %v1896 = vadd.f32 %v1894, 1e-05
    %v1897 = vadd.f32 %v1895, 1e-05
    %v1898 = vrsqrt.pop %v1896
    %v1899 = vrsqrt.pop %v1897
    %v1900 = vmul.f32 %v1884, %v1898
    %v1901 = vmul.f32 %v1885, %v1899
    %v1902 = vlaneseq
    %v1903 = vshrl.u32 %v1902, 7
    %v1904 = vsub.s32 0, %v1903
    %v1905 = vrot.slane %v38, %v1904
    %v1906 = vmul.f32 %v1900, %v1905
    %v1907 = vmul.f32 %v1901, %v1905
    %v1908 = vlaneseq
    %v1909 = vshrl.u32 %v1908, 7
    %v1910 = vsub.s32 0, %v1909
    %v1911 = vrot.slane %v39, %v1910
    %v1912 = vadd.f32 %v1906, %v1911
    %v1913 = vadd.f32 %v1907, %v1911
    %v1914 = vld [vmem:[%s7] sm:$0x1]
    %v1915 = vpack.c.bf16 %v1913, %v1912
    %v1916 = vld [vmem:[%s4] sm:$0xf]
    %v1917 = vld [vmem:[%s4 + $0x4] sm:$0xf]
    %v1918 = vld [vmem:[%s4 + $0x8] sm:$0xf]
    %v1919 = vld [vmem:[%s4 + $0xc] sm:$0xf]
    %v1921 = vlaneseq
    %v1922 = vshrl.u32 %v1921, 7
    %v1923 = vsub.s32 0, %v1922
    %v1924 = vrot.slane %v1914, %v1923
    %v1930 = vunpack.c.l.b16 %v1916
    %v1931 = vunpack.c.l.b16 %v1917
    %v1932 = vunpack.c.l.b16 %v1918
    %v1933 = vunpack.c.l.b16 %v1919
    %v1934 = vpack.c.b16 %v1931, %v1930
    %v1935 = vpack.c.b16 %v1933, %v1932
    %v1939 = vsel %vm87, %v1915, 0
    %1941 = vmatprep.subr.bf16.mxu0 0
    %1942 = vmatpush1.bf16.msra.mxu0 %v1934
    %1943 = vmatprep.subr.bf16.mxu0 0
    %1944 = vmatpush1.bf16.msra.mxu0 %v1935
    %1945 = vmatprep.subr.bf16.mxu0 0
    %1946 = vmatpush1.bf16.msra.mxu0 0
    %1947 = vmatprep.subr.bf16.mxu0 0
    %1948 = vmatpush1.bf16.msra.mxu0 0
    %1949 = vmatprep.subr.bf16.mxu0 0
    %1950 = vmatpush1.bf16.msra.mxu0 0
    %1951 = vmatprep.subr.bf16.mxu0 0
    %1952 = vmatpush1.bf16.msra.mxu0 0
    %1953 = vmatprep.subr.bf16.mxu0 0
    %1954 = vmatpush1.bf16.msra.mxu0 0
    %1955 = vmatprep.subr.bf16.mxu0 0
    %1956 = vmatpush1.bf16.msra.mxu0 0
    %1957 = vmatprep.subr.bf16.mxu0 0
    %1958 = vmatpush1.bf16.msra.mxu0 0
    %1959 = vmatprep.subr.bf16.mxu0 0
    %1960 = vmatpush1.bf16.msra.mxu0 0
    %1961 = vmatprep.subr.bf16.mxu0 0
    %1962 = vmatpush1.bf16.msra.mxu0 0
    %1963 = vmatprep.subr.bf16.mxu0 0
    %1964 = vmatpush1.bf16.msra.mxu0 0
    %1965 = vmatprep.subr.bf16.mxu0 0
    %1966 = vmatpush1.bf16.msra.mxu0 0
    %1967 = vmatprep.subr.bf16.mxu0 0
    %1968 = vmatpush1.bf16.msra.mxu0 0
    %1969 = vmatprep.subr.bf16.mxu0 0
    %1970 = vmatpush1.bf16.msra.mxu0 0
    %1971 = vmatprep.subr.bf16.mxu0 0
    %1972 = vmatpush1.bf16.msra.mxu0 0
    %1973 = vmatprep.mubr.bf16.mxu0 0
    %1974 = vmatmul.mubr.bf16.gmra.mrb[0].mxu0 %v1939
    %v1975 = vpop.f32.mrb[0].mxu0
    %v1976 = vadd.f32 %v1924, %v1975
    %v1977 = vpop.f32.mrb[0].mxu0
    %v1978 = vpop.f32.mrb[0].mxu0
    %v1979 = vadd.f32 %v1924, %v1978
    %v1980 = vpop.f32.mrb[0].mxu0
    %1981 = vdwg.mxu0
    %v1982 = vmax.f32 %v1976, 0.0
    %v1983 = vmax.f32 %v1979, 0.0
    %v1984 = vpack.c.bf16 %v1983, %v1982
    %v1985 = vld [vmem:[%s5] sm:$0xf]
    %v1986 = vld [vmem:[%s5 + $0x4] sm:$0xf]
    %v1987 = vld [vmem:[%s5 + $0x8] sm:$0xf]
    %v1988 = vld [vmem:[%s5 + $0xc] sm:$0xf]
    %v1989 = vld [vmem:[%s5 + $0x10] sm:$0xf]
    %v1990 = vld [vmem:[%s5 + $0x14] sm:$0xf]
    %v1991 = vld [vmem:[%s5 + $0x18] sm:$0xf]
    %v1992 = vld [vmem:[%s5 + $0x1c] sm:$0xf]
    %v1993 = vld [vmem:[%s5 + $0x20] sm:$0xf]
    %v1994 = vld [vmem:[%s5 + $0x24] sm:$0xf]
    %v1995 = vld [vmem:[%s5 + $0x28] sm:$0xf]
    %v1996 = vld [vmem:[%s5 + $0x2c] sm:$0xf]
    %v1997 = vld [vmem:[%s5 + $0x30] sm:$0xf]
    %v1998 = vld [vmem:[%s5 + $0x34] sm:$0xf]
    %v1999 = vld [vmem:[%s5 + $0x38] sm:$0xf]
    %v2000 = vld [vmem:[%s5 + $0x3c] sm:$0xf]
    %v2001 = vlaneseq
    %v2002 = vshrl.u32 %v2001, 7
    %v2003 = vsub.s32 0, %v2002
    %v2004 = vrot.slane %v40, %v2003
    %v2021 = vunpack.c.l.b16 %v1985
    %v2022 = vunpack.c.l.b16 %v1986
    %v2023 = vunpack.c.l.b16 %v1987
    %v2024 = vunpack.c.l.b16 %v1988
    %v2025 = vunpack.c.l.b16 %v1989
    %v2026 = vunpack.c.l.b16 %v1990
    %v2027 = vunpack.c.l.b16 %v1991
    %v2028 = vunpack.c.l.b16 %v1992
    %v2029 = vunpack.c.l.b16 %v1993
    %v2030 = vunpack.c.l.b16 %v1994
    %v2031 = vunpack.c.l.b16 %v1995
    %v2032 = vunpack.c.l.b16 %v1996
    %v2033 = vunpack.c.l.b16 %v1997
    %v2034 = vunpack.c.l.b16 %v1998
    %v2035 = vunpack.c.l.b16 %v1999
    %v2036 = vunpack.c.l.b16 %v2000
    %v2037 = vpack.c.b16 %v2022, %v2021
    %v2038 = vpack.c.b16 %v2024, %v2023
    %v2039 = vpack.c.b16 %v2026, %v2025
    %v2040 = vpack.c.b16 %v2028, %v2027
    %v2041 = vpack.c.b16 %v2030, %v2029
    %v2042 = vpack.c.b16 %v2032, %v2031
    %v2043 = vpack.c.b16 %v2034, %v2033
    %v2044 = vpack.c.b16 %v2036, %v2035
    %2053 = vmatprep.subr.bf16.mxu0 0
    %2054 = vmatpush1.bf16.msra.mxu0 %v2037
    %2055 = vmatprep.subr.bf16.mxu0 0
    %2056 = vmatpush1.bf16.msra.mxu0 %v2038
    %2057 = vmatprep.subr.bf16.mxu0 0
    %2058 = vmatpush1.bf16.msra.mxu0 %v2039
    %2059 = vmatprep.subr.bf16.mxu0 0
    %2060 = vmatpush1.bf16.msra.mxu0 %v2040
    %2061 = vmatprep.subr.bf16.mxu0 0
    %2062 = vmatpush1.bf16.msra.mxu0 %v2041
    %2063 = vmatprep.subr.bf16.mxu0 0
    %2064 = vmatpush1.bf16.msra.mxu0 %v2042
    %2065 = vmatprep.subr.bf16.mxu0 0
    %2066 = vmatpush1.bf16.msra.mxu0 %v2043
    %2067 = vmatprep.subr.bf16.mxu0 0
    %2068 = vmatpush1.bf16.msra.mxu0 %v2044
    %2069 = vmatprep.subr.bf16.mxu0 0
    %2070 = vmatpush1.bf16.msra.mxu0 0
    %2071 = vmatprep.subr.bf16.mxu0 0
    %2072 = vmatpush1.bf16.msra.mxu0 0
    %2073 = vmatprep.subr.bf16.mxu0 0
    %2074 = vmatpush1.bf16.msra.mxu0 0
    %2075 = vmatprep.subr.bf16.mxu0 0
    %2076 = vmatpush1.bf16.msra.mxu0 0
    %2077 = vmatprep.subr.bf16.mxu0 0
    %2078 = vmatpush1.bf16.msra.mxu0 0
    %2079 = vmatprep.subr.bf16.mxu0 0
    %2080 = vmatpush1.bf16.msra.mxu0 0
    %2081 = vmatprep.subr.bf16.mxu0 0
    %2082 = vmatpush1.bf16.msra.mxu0 0
    %2083 = vmatprep.subr.bf16.mxu0 0
    %2084 = vmatpush1.bf16.msra.mxu0 0
    %2085 = vmatprep.mubr.bf16.mxu0 0
    %2086 = vmatmul.mubr.bf16.gmra.mrb[0].mxu0 %v1984
    %v2087 = vpop.f32.mrb[0].mxu0
    %v2088 = vadd.f32 %v2004, %v2087
    %v2089 = vpop.f32.mrb[0].mxu0
    %v2090 = vpop.f32.mrb[0].mxu0
    %v2091 = vadd.f32 %v2004, %v2090
    %v2092 = vpop.f32.mrb[0].mxu0
    %2093 = vdwg.mxu0
    %v2094 = vadd.f32 %v1912, %v2088
    %v2095 = vadd.f32 %v1913, %v2091
    %v2096 = vsel %vm87, %v2094, 0.0
    %2097 = vadd.xlane.f32.xlu0 %v2096
    %v2098 = vpop.xlane.xlu0 %2097
    %v2099 = vsel %vm87, %v2095, 0.0
    %2100 = vadd.xlane.f32.xlu0 %v2099
    %v2101 = vpop.xlane.xlu0 %2100
    %v2102 = vmul.f32 %v2098, %v1881
    %v2103 = vmul.f32 %v2101, %v1881
    %v2104 = vsub.f32 %v2094, %v2102
    %v2105 = vsub.f32 %v2095, %v2103
    %v2106 = vmul.f32 %v2104, %v2104
    %v2107 = vmul.f32 %v2105, %v2105
    %v2108 = vsel %vm87, %v2106, 0.0
    %2109 = vadd.xlane.f32.xlu0 %v2108
    %v2110 = vpop.xlane.xlu0 %2109
    %v2111 = vsel %vm87, %v2107, 0.0
    %2112 = vadd.xlane.f32.xlu0 %v2111
    %v2113 = vpop.xlane.xlu0 %2112
    %v2114 = vmul.f32 %v2110, %v1881
    %v2115 = vmul.f32 %v2113, %v1881
    %v2116 = vadd.f32 %v2114, 1e-05
    %v2117 = vadd.f32 %v2115, 1e-05
    %v2118 = vrsqrt.pop %v2116
    %v2119 = vrsqrt.pop %v2117
    %v2120 = vmul.f32 %v2104, %v2118
    %v2121 = vmul.f32 %v2105, %v2119
    %v2122 = vlaneseq
    %v2123 = vshrl.u32 %v2122, 7
    %v2124 = vsub.s32 0, %v2123
    %v2125 = vrot.slane %v41, %v2124
    %v2126 = vmul.f32 %v2120, %v2125
    %v2127 = vmul.f32 %v2121, %v2125
    %v2128 = vlaneseq
    %v2129 = vshrl.u32 %v2128, 7
    %v2130 = vsub.s32 0, %v2129
    %v2131 = vrot.slane %v42, %v2130
    %v2132 = vadd.f32 %v2126, %v2131
    %v2133 = vadd.f32 %v2127, %v2131
    %2134 = vst.msk [vmem:[#allocation2] sm:$0xff] %vm87, %v2132
    %2135 = vst.msk [vmem:[#allocation2 + $0x8] sm:$0xff] %vm87, %v2133
    // Predicated region
    $region34: #{tpu_custom_call.1} parent=1 // pred_check
      _
    $region35: #{tpu_custom_call.1} parent=1 // pred_check_branch
      %2137 = sbr.rel (0) target = $region37
    $region36: #{tpu_custom_call.1} parent=1 // pred_region
      %s2139 = ssub.s32 256, 256
      %2140 = vsyncadd [#allocation3], %s2139
      %s2141 = sshll.u32 [#allocation2], 4
      %s2142 = int_to_ptr.vmem [resolvable:$true] %s2141
      %2147 = dma.vmem_to_hbm [thread:$0]  %s2142, 256, %s8, [#allocation3], 128, 128, 8
    $region37: #{tpu_custom_call.1} parent=1 // pred_fallthru
      _
    // Predicated region
    $region38: #{tpu_custom_call.1} parent=1 // pred_check
      _
    $region39: #{tpu_custom_call.1} parent=1 // pred_check_branch
      %2149 = sbr.rel (0) target = $region41
    $region40: #{tpu_custom_call.1} parent=1 // pred_region
      %2150 = dma.done [#allocation3], 256
    $region41: #{tpu_custom_call.1} parent=1 // pred_fallthru
      _
    %2151 = vsyncpa [#allocation3], 1

</llo_original>
